<compile_context>
chip_gen: v7x
topology: tpu7x:2x2x1
jax: 0.10.0
libtpu: 0.0.40
codegen_flags: <defaults>
</compile_context>

<pallas_src>
import functools

import jax
import jax.numpy as jnp
from jax.experimental import pallas as pl
from jax.experimental.pallas import tpu as pltpu


def _dw_bn_swish_kernel(x_ref, w_ref, scale_ref, bias_ref, o_ref, *,
                        kh_size, kw_size, stride_h, stride_w, h_out, w_out):
    """One (batch, channel-block) tile: depthwise KxK conv + BN + swish."""
    x = x_ref[0]                                   # (H_in, W_in, LC)
    w = w_ref[...].astype(jnp.float32)             # (KH*KW, LC)
    lc = x.shape[-1]

    acc = jnp.zeros((h_out, w_out, lc), jnp.float32)
    for kh in range(kh_size):
        for kw in range(kw_size):
            xs = x[kh: kh + (h_out - 1) * stride_h + 1: stride_h,
                   kw: kw + (w_out - 1) * stride_w + 1: stride_w, :]
            acc = acc + xs.astype(jnp.float32) * w[kh * kw_size + kw, :]

    # Fused BatchNorm (folded per-channel scale/bias) + Swish epilogue.
    y = acc * scale_ref[0] + bias_ref[0]
    o_ref[0] = (y * jax.nn.sigmoid(y)).astype(o_ref.dtype)


@functools.partial(jax.jit, static_argnames=("stride", "padding", "eps"))
def depthwise_conv_block(x, weight, gamma, beta, running_mean, running_var,
                         *, stride=1, padding=0, eps=1e-5):
    """DepthwiseConv2d + BatchNorm2d (eval, folded) + Swish.

    x:      (N, C, H, W)      NCHW activation (PyTorch layout)
    weight: (C, 1, KH, KW)    depthwise conv filters
    gamma, beta, running_mean, running_var: (C,) BatchNorm parameters/stats
    """
    n, c, h, w = x.shape
    kh_size, kw_size = int(weight.shape[-2]), int(weight.shape[-1])
    sh = sw = int(stride)
    ph = pw = int(padding)

    h_in, w_in = h + 2 * ph, w + 2 * pw
    h_out = (h_in - kh_size) // sh + 1
    w_out = (w_in - kw_size) // sw + 1

    # Fold BatchNorm (inference mode) into a per-channel scale/bias.
    # TODO(synk): training-mode BatchNorm (batch statistics + running-stat
    # update) needs an extra cross-(N,H,W) reduction pass; not implemented here.
    scale = (gamma.astype(jnp.float32) *
             jax.lax.rsqrt(running_var.astype(jnp.float32) + eps))
    bias = beta.astype(jnp.float32) - running_mean.astype(jnp.float32) * scale

    # Channels on the lane axis: pad C up to a multiple of 128 (no-op if aligned).
    c_pad = ((c + 127) // 128) * 128
    lc = min(c_pad, 512)
    while c_pad % lc:
        lc -= 128
    n_cblk = c_pad // lc

    # NCHW -> NHWC + conv spatial padding + channel padding (one fused XLA pass).
    x_nhwc = jnp.transpose(x, (0, 2, 3, 1))
    x_p = jnp.pad(x_nhwc, ((0, 0), (ph, ph), (pw, pw), (0, c_pad - c)))

    w_taps = jnp.transpose(weight.reshape(c, kh_size * kw_size), (1, 0))
    w_p = jnp.pad(w_taps, ((0, 0), (0, c_pad - c)))          # (KH*KW, Cpad)
    scale_p = jnp.pad(scale, (0, c_pad - c)).reshape(1, c_pad)
    bias_p = jnp.pad(bias, (0, c_pad - c)).reshape(1, c_pad)

    kernel = functools.partial(
        _dw_bn_swish_kernel,
        kh_size=kh_size, kw_size=kw_size,
        stride_h=sh, stride_w=sw, h_out=h_out, w_out=w_out)

    # VMEM budget: raise the scoped limit only when the double-buffered working
    # set would exceed the smallest (v5e, 16 MiB) default; stay under v7x's 64 MiB.
    elt = jnp.dtype(x.dtype).itemsize
    block_bytes = (h_in * w_in * lc * elt            # input block
                   + h_out * w_out * lc * elt        # output block
                   + (kh_size * kw_size + 2) * lc * 4)
    vmem_limit = None
    if 2 * block_bytes > 16 * 1024 * 1024:
        vmem_limit = min(64 * 1024 * 1024, 4 * block_bytes)

    out_nhwc = pl.pallas_call(
        kernel,
        out_shape=jax.ShapeDtypeStruct((n, h_out, w_out, c_pad), x.dtype),
        grid_spec=pltpu.PrefetchScalarGridSpec(
            num_scalar_prefetch=0,
            grid=(n, n_cblk),
            in_specs=[
                pl.BlockSpec((1, h_in, w_in, lc), lambda b, cb: (b, 0, 0, cb)),
                pl.BlockSpec((kh_size * kw_size, lc), lambda b, cb: (0, cb)),
                pl.BlockSpec((1, lc), lambda b, cb: (0, cb)),
                pl.BlockSpec((1, lc), lambda b, cb: (0, cb)),
            ],
            out_specs=pl.BlockSpec((1, h_out, w_out, lc),
                                   lambda b, cb: (b, 0, 0, cb)),
        ),
        compiler_params=pltpu.CompilerParams(
            dimension_semantics=("parallel", "parallel"),
            vmem_limit_bytes=vmem_limit,
        ),
    )(x_p, w_p, scale_p, bias_p)

    # Drop the channel padding and return to NCHW (fused by XLA under jit).
    return jnp.transpose(out_nhwc[..., :c], (0, 3, 1, 2))


def _reference(x, weight, gamma, beta, running_mean, running_var,
               *, stride, padding, eps=1e-5):
    """Plain-JAX reference: depthwise conv + folded BN + swish (NCHW)."""
    n, c, h, w = x.shape
    kh_size, kw_size = weight.shape[-2], weight.shape[-1]
    xp = jnp.pad(x.astype(jnp.float32),
                 ((0, 0), (0, 0), (padding, padding), (padding, padding)))
    h_out = (h + 2 * padding - kh_size) // stride + 1
    w_out = (w + 2 * padding - kw_size) // stride + 1
    acc = jnp.zeros((n, c, h_out, w_out), jnp.float32)
    for kh in range(kh_size):
        for kw in range(kw_size):
            xs = xp[:, :, kh: kh + (h_out - 1) * stride + 1: stride,
                    kw: kw + (w_out - 1) * stride + 1: stride]
            acc = acc + xs * weight[:, 0, kh, kw].astype(jnp.float32)[None, :, None, None]
    scale = gamma.astype(jnp.float32) * jax.lax.rsqrt(
        running_var.astype(jnp.float32) + eps)
    bias = beta.astype(jnp.float32) - running_mean.astype(jnp.float32) * scale
    y = acc * scale[None, :, None, None] + bias[None, :, None, None]
    return (y * jax.nn.sigmoid(y)).astype(x.dtype)


if __name__ == "__main__":
    key = jax.random.PRNGKey(0)
    kx, kw_, kg, kb, km, kv = jax.random.split(key, 6)

    # Small NCHW activation, matching the PyTorch DepthwiseConvBlock forward.
    n, c, h, w = 2, 4, 16, 16
    ksize, stride, padding = 3, 1, 1

    x = jax.random.normal(kx, (n, c, h, w), dtype=jnp.float32)
    weight = 0.3 * jax.random.normal(kw_, (c, 1, ksize, ksize), dtype=jnp.float32)
    gamma = 1.0 + 0.1 * jax.random.normal(kg, (c,), dtype=jnp.float32)
    beta = 0.1 * jax.random.normal(kb, (c,), dtype=jnp.float32)
    running_mean = 0.1 * jax.random.normal(km, (c,), dtype=jnp.float32)
    running_var = 0.5 + jnp.abs(jax.random.normal(kv, (c,), dtype=jnp.float32))

    y = depthwise_conv_block(x, weight, gamma, beta, running_mean, running_var,
                             stride=stride, padding=padding)
    y = jax.block_until_ready(y)

    ref = _reference(x, weight, gamma, beta, running_mean, running_var,
                     stride=stride, padding=padding)

    assert y.shape == ref.shape == (n, c, h, w), (y.shape, ref.shape)
    assert y.dtype == x.dtype
    assert jnp.allclose(y, ref, atol=2e-5, rtol=2e-5), \
        float(jnp.max(jnp.abs(y - ref)))

    print("KERNEL_OK")
</pallas_src>

<mosaic_0001>
module attributes {stable_mosaic.version = 11 : i64} {
  func.func @_dw_bn_swish_kernel(%arg0: i32, %arg1: i32, %arg2: memref<1x18x18x128xf32, #tpu.memory_space<vmem>>, %arg3: memref<9x128xf32, #tpu.memory_space<vmem>>, %arg4: memref<1x128xf32, #tpu.memory_space<vmem>>, %arg5: memref<1x128xf32, #tpu.memory_space<vmem>>, %arg6: memref<1x16x16x128xf32, #tpu.memory_space<vmem>>) attributes {dimension_semantics = [#tpu.dimension_semantics<parallel>, #tpu.dimension_semantics<parallel>], iteration_bounds = array<i64: 2, 1>, scalar_prefetch = 0 : i64, scratch_operands = 0 : i64, tpu.core_type = #tpu.core_type<tc>, window_params = [{transform_indices = @transform_0, window_bounds = array<i64: 1, 18, 18, 128>}, {transform_indices = @transform_1, window_bounds = array<i64: 9, 128>}, {transform_indices = @transform_2, window_bounds = array<i64: 1, 128>}, {transform_indices = @transform_3, window_bounds = array<i64: 1, 128>}, {transform_indices = @transform_4, window_bounds = array<i64: 1, 16, 16, 128>}]} {
    %c0 = arith.constant 0 : index
    %c0_0 = arith.constant 0 : index
    %c0_1 = arith.constant 0 : index
    %c0_2 = arith.constant 0 : index
    %0 = vector.load %arg2[%c0, %c0_0, %c0_1, %c0_2] : memref<1x18x18x128xf32, #tpu.memory_space<vmem>>, vector<1x18x18x128xf32>
    %1 = vector.shape_cast %0 : vector<1x18x18x128xf32> to vector<18x18x128xf32>
    %c0_3 = arith.constant 0 : index
    %c0_4 = arith.constant 0 : index
    %2 = vector.load %arg3[%c0_3, %c0_4] : memref<9x128xf32, #tpu.memory_space<vmem>>, vector<9x128xf32>
    %cst = arith.constant 0.000000e+00 : f32
    %3 = vector.broadcast %cst : f32 to vector<16x16x128xf32>
    %4 = vector.extract_strided_slice %1 {offsets = [0, 0, 0], sizes = [16, 16, 128], strides = [1, 1, 1]} : vector<18x18x128xf32> to vector<16x16x128xf32>
    %5 = vector.extract_strided_slice %2 {offsets = [0, 0], sizes = [1, 128], strides = [1, 1]} : vector<9x128xf32> to vector<1x128xf32>
    %6 = vector.shape_cast %5 : vector<1x128xf32> to vector<128xf32>
    %7 = vector.shape_cast %6 : vector<128xf32> to vector<1x1x128xf32>
    %8 = vector.broadcast %7 : vector<1x1x128xf32> to vector<16x16x128xf32>
    %9 = arith.mulf %4, %8 : vector<16x16x128xf32>
    %10 = arith.addf %3, %9 : vector<16x16x128xf32>
    %11 = vector.extract_strided_slice %1 {offsets = [0, 1, 0], sizes = [16, 16, 128], strides = [1, 1, 1]} : vector<18x18x128xf32> to vector<16x16x128xf32>
    %12 = vector.extract_strided_slice %2 {offsets = [1, 0], sizes = [1, 128], strides = [1, 1]} : vector<9x128xf32> to vector<1x128xf32>
    %13 = vector.shape_cast %12 : vector<1x128xf32> to vector<128xf32>
    %14 = vector.shape_cast %13 : vector<128xf32> to vector<1x1x128xf32>
    %15 = vector.broadcast %14 : vector<1x1x128xf32> to vector<16x16x128xf32>
    %16 = arith.mulf %11, %15 : vector<16x16x128xf32>
    %17 = arith.addf %10, %16 : vector<16x16x128xf32>
    %18 = vector.extract_strided_slice %1 {offsets = [0, 2, 0], sizes = [16, 16, 128], strides = [1, 1, 1]} : vector<18x18x128xf32> to vector<16x16x128xf32>
    %19 = vector.extract_strided_slice %2 {offsets = [2, 0], sizes = [1, 128], strides = [1, 1]} : vector<9x128xf32> to vector<1x128xf32>
    %20 = vector.shape_cast %19 : vector<1x128xf32> to vector<128xf32>
    %21 = vector.shape_cast %20 : vector<128xf32> to vector<1x1x128xf32>
    %22 = vector.broadcast %21 : vector<1x1x128xf32> to vector<16x16x128xf32>
    %23 = arith.mulf %18, %22 : vector<16x16x128xf32>
    %24 = arith.addf %17, %23 : vector<16x16x128xf32>
    %25 = vector.extract_strided_slice %1 {offsets = [1, 0, 0], sizes = [16, 16, 128], strides = [1, 1, 1]} : vector<18x18x128xf32> to vector<16x16x128xf32>
    %26 = vector.extract_strided_slice %2 {offsets = [3, 0], sizes = [1, 128], strides = [1, 1]} : vector<9x128xf32> to vector<1x128xf32>
    %27 = vector.shape_cast %26 : vector<1x128xf32> to vector<128xf32>
    %28 = vector.shape_cast %27 : vector<128xf32> to vector<1x1x128xf32>
    %29 = vector.broadcast %28 : vector<1x1x128xf32> to vector<16x16x128xf32>
    %30 = arith.mulf %25, %29 : vector<16x16x128xf32>
    %31 = arith.addf %24, %30 : vector<16x16x128xf32>
    %32 = vector.extract_strided_slice %1 {offsets = [1, 1, 0], sizes = [16, 16, 128], strides = [1, 1, 1]} : vector<18x18x128xf32> to vector<16x16x128xf32>
    %33 = vector.extract_strided_slice %2 {offsets = [4, 0], sizes = [1, 128], strides = [1, 1]} : vector<9x128xf32> to vector<1x128xf32>
    %34 = vector.shape_cast %33 : vector<1x128xf32> to vector<128xf32>
    %35 = vector.shape_cast %34 : vector<128xf32> to vector<1x1x128xf32>
    %36 = vector.broadcast %35 : vector<1x1x128xf32> to vector<16x16x128xf32>
    %37 = arith.mulf %32, %36 : vector<16x16x128xf32>
    %38 = arith.addf %31, %37 : vector<16x16x128xf32>
    %39 = vector.extract_strided_slice %1 {offsets = [1, 2, 0], sizes = [16, 16, 128], strides = [1, 1, 1]} : vector<18x18x128xf32> to vector<16x16x128xf32>
    %40 = vector.extract_strided_slice %2 {offsets = [5, 0], sizes = [1, 128], strides = [1, 1]} : vector<9x128xf32> to vector<1x128xf32>
    %41 = vector.shape_cast %40 : vector<1x128xf32> to vector<128xf32>
    %42 = vector.shape_cast %41 : vector<128xf32> to vector<1x1x128xf32>
    %43 = vector.broadcast %42 : vector<1x1x128xf32> to vector<16x16x128xf32>
    %44 = arith.mulf %39, %43 : vector<16x16x128xf32>
    %45 = arith.addf %38, %44 : vector<16x16x128xf32>
    %46 = vector.extract_strided_slice %1 {offsets = [2, 0, 0], sizes = [16, 16, 128], strides = [1, 1, 1]} : vector<18x18x128xf32> to vector<16x16x128xf32>
    %47 = vector.extract_strided_slice %2 {offsets = [6, 0], sizes = [1, 128], strides = [1, 1]} : vector<9x128xf32> to vector<1x128xf32>
    %48 = vector.shape_cast %47 : vector<1x128xf32> to vector<128xf32>
    %49 = vector.shape_cast %48 : vector<128xf32> to vector<1x1x128xf32>
    %50 = vector.broadcast %49 : vector<1x1x128xf32> to vector<16x16x128xf32>
    %51 = arith.mulf %46, %50 : vector<16x16x128xf32>
    %52 = arith.addf %45, %51 : vector<16x16x128xf32>
    %53 = vector.extract_strided_slice %1 {offsets = [2, 1, 0], sizes = [16, 16, 128], strides = [1, 1, 1]} : vector<18x18x128xf32> to vector<16x16x128xf32>
    %54 = vector.extract_strided_slice %2 {offsets = [7, 0], sizes = [1, 128], strides = [1, 1]} : vector<9x128xf32> to vector<1x128xf32>
    %55 = vector.shape_cast %54 : vector<1x128xf32> to vector<128xf32>
    %56 = vector.shape_cast %55 : vector<128xf32> to vector<1x1x128xf32>
    %57 = vector.broadcast %56 : vector<1x1x128xf32> to vector<16x16x128xf32>
    %58 = arith.mulf %53, %57 : vector<16x16x128xf32>
    %59 = arith.addf %52, %58 : vector<16x16x128xf32>
    %60 = vector.extract_strided_slice %1 {offsets = [2, 2, 0], sizes = [16, 16, 128], strides = [1, 1, 1]} : vector<18x18x128xf32> to vector<16x16x128xf32>
    %61 = vector.extract_strided_slice %2 {offsets = [8, 0], sizes = [1, 128], strides = [1, 1]} : vector<9x128xf32> to vector<1x128xf32>
    %62 = vector.shape_cast %61 : vector<1x128xf32> to vector<128xf32>
    %63 = vector.shape_cast %62 : vector<128xf32> to vector<1x1x128xf32>
    %64 = vector.broadcast %63 : vector<1x1x128xf32> to vector<16x16x128xf32>
    %65 = arith.mulf %60, %64 : vector<16x16x128xf32>
    %66 = arith.addf %59, %65 : vector<16x16x128xf32>
    %c0_5 = arith.constant 0 : index
    %c0_6 = arith.constant 0 : index
    %67 = vector.load %arg4[%c0_5, %c0_6] : memref<1x128xf32, #tpu.memory_space<vmem>>, vector<1x128xf32>
    %68 = vector.shape_cast %67 : vector<1x128xf32> to vector<128xf32>
    %69 = vector.shape_cast %68 : vector<128xf32> to vector<1x1x128xf32>
    %70 = vector.broadcast %69 : vector<1x1x128xf32> to vector<16x16x128xf32>
    %71 = arith.mulf %66, %70 : vector<16x16x128xf32>
    %c0_7 = arith.constant 0 : index
    %c0_8 = arith.constant 0 : index
    %72 = vector.load %arg5[%c0_7, %c0_8] : memref<1x128xf32, #tpu.memory_space<vmem>>, vector<1x128xf32>
    %73 = vector.shape_cast %72 : vector<1x128xf32> to vector<128xf32>
    %74 = vector.shape_cast %73 : vector<128xf32> to vector<1x1x128xf32>
    %75 = vector.broadcast %74 : vector<1x1x128xf32> to vector<16x16x128xf32>
    %76 = arith.addf %71, %75 : vector<16x16x128xf32>
    %77 = arith.negf %76 : vector<16x16x128xf32>
    %78 = math.exp %77 : vector<16x16x128xf32>
    %cst_9 = arith.constant 1.000000e+00 : f32
    %79 = vector.broadcast %cst_9 : f32 to vector<16x16x128xf32>
    %80 = arith.addf %79, %78 : vector<16x16x128xf32>
    %81 = arith.divf %79, %80 : vector<16x16x128xf32>
    %82 = arith.mulf %76, %81 : vector<16x16x128xf32>
    %c0_10 = arith.constant 0 : index
    %c0_11 = arith.constant 0 : index
    %c0_12 = arith.constant 0 : index
    %c0_13 = arith.constant 0 : index
    %83 = vector.load %arg6[%c0_10, %c0_11, %c0_12, %c0_13] : memref<1x16x16x128xf32, #tpu.memory_space<vmem>>, vector<1x16x16x128xf32>
    %84 = vector.shape_cast %83 : vector<1x16x16x128xf32> to vector<16x16x128xf32>
    %85 = vector.shape_cast %82 : vector<16x16x128xf32> to vector<1x16x16x128xf32>
    tpu.vector_store %arg6[%c0_10, %c0_11, %c0_12, %c0_13], %85 {strides = array<i32>} : memref<1x16x16x128xf32, #tpu.memory_space<vmem>>, vector<1x16x16x128xf32>,
    return
  }
  func.func @transform_0(%arg0: i32, %arg1: i32) -> (i32, i32, i32, i32) {
    %c0_i32 = arith.constant 0 : i32
    %c0_i32_0 = arith.constant 0 : i32
    %c0_i32_1 = arith.constant 0 : i32
    return %arg0, %c0_i32, %c0_i32_0, %arg1 : i32, i32, i32, i32
  }
  func.func @transform_1(%arg0: i32, %arg1: i32) -> (i32, i32) {
    %c0_i32 = arith.constant 0 : i32
    %c0_i32_0 = arith.constant 0 : i32
    return %c0_i32, %arg1 : i32, i32
  }
  func.func @transform_2(%arg0: i32, %arg1: i32) -> (i32, i32) {
    %c0_i32 = arith.constant 0 : i32
    %c0_i32_0 = arith.constant 0 : i32
    return %c0_i32, %arg1 : i32, i32
  }
  func.func @transform_3(%arg0: i32, %arg1: i32) -> (i32, i32) {
    %c0_i32 = arith.constant 0 : i32
    %c0_i32_0 = arith.constant 0 : i32
    return %c0_i32, %arg1 : i32, i32
  }
  func.func @transform_4(%arg0: i32, %arg1: i32) -> (i32, i32, i32, i32) {
    %c0_i32 = arith.constant 0 : i32
    %c0_i32_0 = arith.constant 0 : i32
    %c0_i32_1 = arith.constant 0 : i32
    return %arg0, %c0_i32, %c0_i32_0, %arg1 : i32, i32, i32, i32
  }
}

</mosaic_0001>

<llo_original>
// kernel: depthwise_conv_block.1
$region0: #{depthwise_conv_block.1}
  #allocation0 [shape = 'u32[]', space=smem, size = 0x4, offset = 0x4, fixed_abs, tag = 'smem constant byte address 0x4 - core index']
  #allocation1 [shape = 'u32[144,128]{1,0:T(1,128)}', space=vmem, size = 0x12000, scoped, tag = 'internal scratch']
  %s0 = inlined_call_operand.vmem [shape: f32[2,18,18,128], index: 0, kind: input, shape index: {}]
  %s1 = inlined_call_operand.vmem [shape: f32[9,128], index: 1, kind: input, shape index: {}]
  %s2 = inlined_call_operand.vmem [shape: f32[1,128], index: 2, kind: input, shape index: {}]
  %s3 = inlined_call_operand.vmem [shape: f32[1,128], index: 3, kind: input, shape index: {}]
  %s4 = inlined_call_operand.vmem [shape: f32[2,16,16,128], index: 4, kind: output, shape index: {}]
  %s5 = sld [smem:[#allocation0]]
  $region49: #{depthwise_conv_block.1} parent=0
    _
  %s7 = ssub.s32 1, %s5
  %s8 = scalar_select 0, %s7, %s5
  loop: start=0, step=1, limit=4
  $region2: #{depthwise_conv_block.1} parent=0 // loop_pre_header
    _
  $region3: #{depthwise_conv_block.1} parent=0 // loop_header
    %s10 = sphi 0, %s14
    %p11 = scmp.ge.s32.totalorder %s10, 4
    %s17 = sphi 0, %s29
    %s18 = sphi 0, %s25
    %s19 = sphi 0, %s17
    %s20 = sphi 0, %s18
    %s21 = sphi 0, %s19
    %s22 = sphi 0, %s20
    %s34 = sphi 0, %s36
    %s37 = sphi 0, %s34
    %s38 = sphi 0, %s37
    %s54 = sphi 0, %s38
    %s60 = sphi 0, %s62
    %s63 = sphi 0, %s60
    %s64 = sphi 0, %s63
    %s80 = sphi 0, %s64
    %s86 = sphi 0, %s88
    %s89 = sphi 0, %s86
    %s90 = sphi 0, %s89
    %s106 = sphi 0, %s90
    %s112 = sphi 0, %s114
    %s115 = sphi 0, %s112
    %s116 = sphi 0, %s115
    %s132 = sphi 0, %s116
    %s140 = sphi 0, %s142
    %s143 = sphi 0, %s140
    %s144 = sphi 0, %s143
    %s160 = sphi 0, %s144
  $region4: #{depthwise_conv_block.1} parent=0 // loop_header_branch
    %13 = sbr.rel (%p11) target = $region8
  $region5: #{depthwise_conv_block.1} parent=0 // loop_body
    %s15 = ssub.s32 %s10, 1
    %s16 = ssub.s32 %s10, 2
    %s23 = sadd.s32 1, %s18
    %p24 = scmp.ge.s32.totalorder %s23, 1
    %s25 = scalar_select %p24, 0, %s23
    %s26 = sadd.s32 1, %s17
    %s27 = scalar_select %p24, %s26, %s17
    %p28 = scmp.ge.s32.totalorder %s27, 2
    %s29 = scalar_select %p28, 0, %s27
    %s30 = ssub.s32 %s17, %s29
    %s31 = ssub.s32 %s18, %s25
    %s32 = sor.u32 %s30, %s31
    %p33 = scmp.eq.s32.totalorder %s32, 0
    %s35 = sadd.s32 %s34, 1
    %s36 = scalar_select %p33, %s34, %s35
    %p39 = pneg %p33
    %p40 = scmp.eq.s32.totalorder %s10, 1
    %p41 = por %p39, %p40
    %p42 = scmp.ne.s32.totalorder %s34, %s37
    %p43 = scmp.eq.s32.totalorder %s10, 0
    %p44 = por %p42, %p43
    %p45 = scmp.ne.s32.totalorder %s34, %s37
    %p46 = scmp.eq.s32.totalorder %s15, 1
    %p47 = por %p45, %p46
    %p48 = scmp.ne.s32.totalorder %s37, %s38
    %p49 = scmp.eq.s32.totalorder %s15, 0
    %p50 = por %p48, %p49
    %p51 = scmp.ne.s32.totalorder %s37, %s38
    %p52 = scmp.eq.s32.totalorder %s16, 1
    %p53 = por %p51, %p52
    %p55 = scmp.ne.s32.totalorder %s38, %s54
    %p56 = scmp.eq.s32.totalorder %s16, 0
    %p57 = por %p55, %p56
    %s58 = ssub.s32 %s18, %s25
    %p59 = scmp.eq.s32.totalorder %s58, 0
    %s61 = sadd.s32 %s60, 1
    %s62 = scalar_select %p59, %s60, %s61
    %p65 = pneg %p59
    %p66 = scmp.eq.s32.totalorder %s10, 1
    %p67 = por %p65, %p66
    %p68 = scmp.ne.s32.totalorder %s60, %s63
    %p69 = scmp.eq.s32.totalorder %s10, 0
    %p70 = por %p68, %p69
    %p71 = scmp.ne.s32.totalorder %s60, %s63
    %p72 = scmp.eq.s32.totalorder %s15, 1
    %p73 = por %p71, %p72
    %p74 = scmp.ne.s32.totalorder %s63, %s64
    %p75 = scmp.eq.s32.totalorder %s15, 0
    %p76 = por %p74, %p75
    %p77 = scmp.ne.s32.totalorder %s63, %s64
    %p78 = scmp.eq.s32.totalorder %s16, 1
    %p79 = por %p77, %p78
    %p81 = scmp.ne.s32.totalorder %s64, %s80
    %p82 = scmp.eq.s32.totalorder %s16, 0
    %p83 = por %p81, %p82
    %s84 = ssub.s32 %s18, %s25
    %p85 = scmp.eq.s32.totalorder %s84, 0
    %s87 = sadd.s32 %s86, 1
    %s88 = scalar_select %p85, %s86, %s87
    %p91 = pneg %p85
    %p92 = scmp.eq.s32.totalorder %s10, 1
    %p93 = por %p91, %p92
    %p94 = scmp.ne.s32.totalorder %s86, %s89
    %p95 = scmp.eq.s32.totalorder %s10, 0
    %p96 = por %p94, %p95
    %p97 = scmp.ne.s32.totalorder %s86, %s89
    %p98 = scmp.eq.s32.totalorder %s15, 1
    %p99 = por %p97, %p98
    %p100 = scmp.ne.s32.totalorder %s89, %s90
    %p101 = scmp.eq.s32.totalorder %s15, 0
    %p102 = por %p100, %p101
    %p103 = scmp.ne.s32.totalorder %s89, %s90
    %p104 = scmp.eq.s32.totalorder %s16, 1
    %p105 = por %p103, %p104
    %p107 = scmp.ne.s32.totalorder %s90, %s106
    %p108 = scmp.eq.s32.totalorder %s16, 0
    %p109 = por %p107, %p108
    %s110 = ssub.s32 %s18, %s25
    %p111 = scmp.eq.s32.totalorder %s110, 0
    %s113 = sadd.s32 %s112, 1
    %s114 = scalar_select %p111, %s112, %s113
    %p117 = pneg %p111
    %p118 = scmp.eq.s32.totalorder %s10, 1
    %p119 = por %p117, %p118
    %p120 = scmp.ne.s32.totalorder %s112, %s115
    %p121 = scmp.eq.s32.totalorder %s10, 0
    %p122 = por %p120, %p121
    %p123 = scmp.ne.s32.totalorder %s112, %s115
    %p124 = scmp.eq.s32.totalorder %s15, 1
    %p125 = por %p123, %p124
    %p126 = scmp.ne.s32.totalorder %s115, %s116
    %p127 = scmp.eq.s32.totalorder %s15, 0
    %p128 = por %p126, %p127
    %p129 = scmp.ne.s32.totalorder %s115, %s116
    %p130 = scmp.eq.s32.totalorder %s16, 1
    %p131 = por %p129, %p130
    %p133 = scmp.ne.s32.totalorder %s116, %s132
    %p134 = scmp.eq.s32.totalorder %s16, 0
    %p135 = por %p133, %p134
    %s136 = ssub.s32 %s17, %s29
    %s137 = ssub.s32 %s18, %s25
    %s138 = sor.u32 %s136, %s137
    %p139 = scmp.eq.s32.totalorder %s138, 0
    %s141 = sadd.s32 %s140, 1
    %s142 = scalar_select %p139, %s140, %s141
    %p145 = pneg %p139
    %p146 = scmp.eq.s32.totalorder %s10, 1
    %p147 = por %p145, %p146
    %p148 = scmp.ne.s32.totalorder %s140, %s143
    %p149 = scmp.eq.s32.totalorder %s10, 0
    %p150 = por %p148, %p149
    %p151 = scmp.ne.s32.totalorder %s140, %s143
    %p152 = scmp.eq.s32.totalorder %s15, 1
    %p153 = por %p151, %p152
    %p154 = scmp.ne.s32.totalorder %s143, %s144
    %p155 = scmp.eq.s32.totalorder %s15, 0
    %p156 = por %p154, %p155
    %p157 = scmp.ne.s32.totalorder %s143, %s144
    %p158 = scmp.eq.s32.totalorder %s16, 1
    %p159 = por %p157, %p158
    %p161 = scmp.ne.s32.totalorder %s144, %s160
    %p162 = scmp.eq.s32.totalorder %s16, 0
    %p163 = por %p161, %p162
    %p164 = scmp.le.s32.totalorder 1, %s10
    %p165 = scmp.lt.s32.totalorder %s10, 3
    %p166 = pnand %p164, %p165
    %p167 = pneg %p166
    // Predicated region
    $region9: #{depthwise_conv_block.1} parent=5 // pred_check
      _
    $region10: #{depthwise_conv_block.1} parent=5 // pred_check_branch
      %169 = sbr.rel (%p166) target = $region12
    $region11: #{depthwise_conv_block.1} parent=5 // pred_region
      %s170 = ssub.s32 %s10, 1
      // Predicated region
      $region13: #{depthwise_conv_block.1} parent=11 // pred_check
        %p171 = pneg %p76
      $region14: #{depthwise_conv_block.1} parent=11 // pred_check_branch
        %173 = sbr.rel (%p171) target = $region16
      $region15: #{depthwise_conv_block.1} parent=11 // pred_region
        %p174 = scmp.lt.s32.totalorder %s20, 0
        %s175 = scalar_select %p174, %s20, 0
        %s176 = smul.addr %s175, 8
        %s177 = scalar_lea.vmem %s1, %s176
      $region16: #{depthwise_conv_block.1} parent=11 // pred_fallthru
        _
      // Predicated region
      $region17: #{depthwise_conv_block.1} parent=11 // pred_check
        %p178 = pneg %p102
      $region18: #{depthwise_conv_block.1} parent=11 // pred_check_branch
        %180 = sbr.rel (%p178) target = $region20
      $region19: #{depthwise_conv_block.1} parent=11 // pred_region
        %p181 = scmp.lt.s32.totalorder %s20, 0
        %s182 = scalar_select %p181, %s20, 0
        %s183 = scalar_lea.vmem %s2, %s182
      $region20: #{depthwise_conv_block.1} parent=11 // pred_fallthru
        _
      // Predicated region
      $region21: #{depthwise_conv_block.1} parent=11 // pred_check
        %p184 = pneg %p128
      $region22: #{depthwise_conv_block.1} parent=11 // pred_check_branch
        %186 = sbr.rel (%p184) target = $region24
      $region23: #{depthwise_conv_block.1} parent=11 // pred_region
        %p187 = scmp.lt.s32.totalorder %s20, 0
        %s188 = scalar_select %p187, %s20, 0
        %s189 = scalar_lea.vmem %s3, %s188
      $region24: #{depthwise_conv_block.1} parent=11 // pred_fallthru
        _
    $region12: #{depthwise_conv_block.1} parent=5 // pred_fallthru
      _
    %p190 = scmp.lt.s32.totalorder %s10, 2
    // Predicated region
    $region25: #{depthwise_conv_block.1} parent=5 // pred_check
      %p191 = pneg %p190
    $region26: #{depthwise_conv_block.1} parent=5 // pred_check_branch
      %193 = sbr.rel (%p191) target = $region28
    $region27: #{depthwise_conv_block.1} parent=5 // pred_region
      // Predicated region
      $region29: #{depthwise_conv_block.1} parent=27 // pred_check
        %p194 = pneg %p44
      $region30: #{depthwise_conv_block.1} parent=27 // pred_check_branch
        %196 = sbr.rel (%p194) target = $region32
      $region31: #{depthwise_conv_block.1} parent=27 // pred_region
        %p197 = scmp.lt.s32.totalorder %s17, 1
        %s198 = scalar_select %p197, %s17, 1
        %p199 = scmp.lt.s32.totalorder %s18, 0
        %s200 = scalar_select %p199, %s18, 0
        %s201 = smul.addr %s198, 54
        %s202 = sadd.s32 %s200, %s201
        %s203 = smul.addr %s202, 8
        %s204 = scalar_lea.vmem %s0, %s203
      $region32: #{depthwise_conv_block.1} parent=27 // pred_fallthru
        _
    $region28: #{depthwise_conv_block.1} parent=5 // pred_fallthru
      _
    %p205 = scmp.le.s32.totalorder 1, %s10
    %p206 = scmp.lt.s32.totalorder %s10, 3
    %p207 = pnand %p205, %p206
    %p208 = pneg %p207
    // Predicated region
    $region33: #{depthwise_conv_block.1} parent=5 // pred_check
      _
    $region34: #{depthwise_conv_block.1} parent=5 // pred_check_branch
      %210 = sbr.rel (%p207) target = $region36
    $region35: #{depthwise_conv_block.1} parent=5 // pred_region
      %s211 = ssub.s32 %s10, 1
      %p212 = scmp.lt.s32.totalorder %s19, 1
      %s213 = scalar_select %p212, %s19, 1
      %p214 = scmp.lt.s32.totalorder %s20, 0
      %s215 = scalar_select %p214, %s20, 0
      %s216 = smul.addr %s213, 54
      %s217 = sadd.s32 %s215, %s216
      %s218 = smul.addr %s217, 8
      %s219 = scalar_lea.vmem %s0, %s218
      %p220 = pneg %p50
      %p221 = pneg %p47
      %p222 = scmp.lt.s32.totalorder %s20, 0
      %s223 = scalar_select %p222, %s20, 0
      %s224 = smul.addr %s223, 8
      %s225 = scalar_lea.vmem %s1, %s224
      %p226 = pneg %p76
      %p227 = pneg %p73
      %p228 = scmp.lt.s32.totalorder %s20, 0
      %s229 = scalar_select %p228, %s20, 0
      %s230 = scalar_lea.vmem %s2, %s229
      %p231 = pneg %p102
      %p232 = pneg %p99
      %p233 = scmp.lt.s32.totalorder %s20, 0
      %s234 = scalar_select %p233, %s20, 0
      %s235 = scalar_lea.vmem %s3, %s234
      %p236 = pneg %p128
      %p237 = pneg %p125
      %p238 = pneg %p156
      %p239 = pneg %p153
      %p240 = scmp.lt.s32.totalorder %s19, 1
      %s241 = scalar_select %p240, %s19, 1
      %p242 = scmp.lt.s32.totalorder %s20, 0
      %s243 = scalar_select %p242, %s20, 0
      %s244 = smul.addr %s241, 32
      %s245 = sadd.s32 %s243, %s244
      %s246 = smul.addr %s245, 8
      %s247 = scalar_lea.vmem %s4, %s246
      %p248 = scmp.lt.s32.totalorder %s19, 1
      %s249 = scalar_select %p248, %s19, 1
      %p250 = scmp.lt.s32.totalorder %s20, 0
      %s251 = scalar_select %p250, %s20, 0
      %s252 = smul.addr %s249, 54
      %s253 = sadd.s32 %s251, %s252
      %s254 = smul.addr %s253, 8
      %s255 = scalar_lea.vmem %s0, %s254
      %p256 = scmp.lt.s32.totalorder %s20, 0
      %s257 = scalar_select %p256, %s20, 0
      %s258 = smul.addr %s257, 8
      %s259 = scalar_lea.vmem %s1, %s258
      %p260 = scmp.lt.s32.totalorder %s20, 0
      %s261 = scalar_select %p260, %s20, 0
      %s262 = scalar_lea.vmem %s2, %s261
      %p263 = scmp.lt.s32.totalorder %s20, 0
      %s264 = scalar_select %p263, %s20, 0
      %s265 = scalar_lea.vmem %s3, %s264
      %p266 = scmp.lt.s32.totalorder %s19, 1
      %s267 = scalar_select %p266, %s19, 1
      %p268 = scmp.lt.s32.totalorder %s20, 0
      %s269 = scalar_select %p268, %s20, 0
      %s270 = smul.addr %s267, 32
      %s271 = sadd.s32 %s269, %s270
      %s272 = smul.addr %s271, 8
      %s273 = scalar_lea.vmem %s4, %s272
      %v274 = vld [vmem:[%s255] sm:$0xff]
      %v275 = vld [vmem:[%s255 + $0x8] sm:$0xff]
      %v276 = vld [vmem:[%s255 + $0x10] sm:$0x3]
      %v277 = vld [vmem:[%s255 + $0x18] sm:$0xff]
      %v278 = vld [vmem:[%s255 + $0x20] sm:$0xff]
      %v279 = vld [vmem:[%s255 + $0x28] sm:$0x3]
      %v280 = vld [vmem:[%s255 + $0x30] sm:$0xff]
      %v281 = vld [vmem:[%s255 + $0x38] sm:$0xff]
      %v282 = vld [vmem:[%s255 + $0x40] sm:$0x3]
      %v283 = vld [vmem:[%s255 + $0x48] sm:$0xff]
      %v284 = vld [vmem:[%s255 + $0x50] sm:$0xff]
      %v285 = vld [vmem:[%s255 + $0x58] sm:$0x3]
      %v286 = vld [vmem:[%s255 + $0x60] sm:$0xff]
      %v287 = vld [vmem:[%s255 + $0x68] sm:$0xff]
      %v288 = vld [vmem:[%s255 + $0x70] sm:$0x3]
      %v289 = vld [vmem:[%s255 + $0x78] sm:$0xff]
      %v290 = vld [vmem:[%s255 + $0x80] sm:$0xff]
      %v291 = vld [vmem:[%s255 + $0x88] sm:$0x3]
      %v292 = vld [vmem:[%s255 + $0x90] sm:$0xff]
      %v293 = vld [vmem:[%s255 + $0x98] sm:$0xff]
      %v294 = vld [vmem:[%s255 + $0xa0] sm:$0x3]
      %v295 = vld [vmem:[%s255 + $0xa8] sm:$0xff]
      %v296 = vld [vmem:[%s255 + $0xb0] sm:$0xff]
      %v297 = vld [vmem:[%s255 + $0xb8] sm:$0x3]
      %v298 = vld [vmem:[%s255 + $0xc0] sm:$0xff]
      %v299 = vld [vmem:[%s255 + $0xc8] sm:$0xff]
      %v300 = vld [vmem:[%s255 + $0xd0] sm:$0x3]
      %v301 = vld [vmem:[%s255 + $0xd8] sm:$0xff]
      %v302 = vld [vmem:[%s255 + $0xe0] sm:$0xff]
      %v303 = vld [vmem:[%s255 + $0xe8] sm:$0x3]
      %v304 = vld [vmem:[%s255 + $0xf0] sm:$0xff]
      %v305 = vld [vmem:[%s255 + $0xf8] sm:$0xff]
      %v306 = vld [vmem:[%s255 + $0x100] sm:$0x3]
      %v307 = vld [vmem:[%s255 + $0x108] sm:$0xff]
      %v308 = vld [vmem:[%s255 + $0x110] sm:$0xff]
      %v309 = vld [vmem:[%s255 + $0x118] sm:$0x3]
      %v310 = vld [vmem:[%s255 + $0x120] sm:$0xff]
      %v311 = vld [vmem:[%s255 + $0x128] sm:$0xff]
      %v312 = vld [vmem:[%s255 + $0x130] sm:$0x3]
      %v313 = vld [vmem:[%s255 + $0x138] sm:$0xff]
      %v314 = vld [vmem:[%s255 + $0x140] sm:$0xff]
      %v315 = vld [vmem:[%s255 + $0x148] sm:$0x3]
      %v316 = vld [vmem:[%s255 + $0x150] sm:$0xff]
      %v317 = vld [vmem:[%s255 + $0x158] sm:$0xff]
      %v318 = vld [vmem:[%s255 + $0x160] sm:$0x3]
      %v319 = vld [vmem:[%s255 + $0x168] sm:$0xff]
      %v320 = vld [vmem:[%s255 + $0x170] sm:$0xff]
      %v321 = vld [vmem:[%s255 + $0x178] sm:$0x3]
      %v322 = vld [vmem:[%s255 + $0x180] sm:$0xff]
      %v323 = vld [vmem:[%s255 + $0x188] sm:$0xff]
      %v324 = vld [vmem:[%s255 + $0x190] sm:$0x3]
      %v325 = vld [vmem:[%s255 + $0x198] sm:$0xff]
      %v326 = vld [vmem:[%s255 + $0x1a0] sm:$0xff]
      %v327 = vld [vmem:[%s255 + $0x1a8] sm:$0x3]
      %v328 = vld [vmem:[%s259] sm:$0xff]
      %v329 = vld [vmem:[%s259 + $0x8] sm:$0x1]
      %v330 = vlaneseq
      %v331 = vshrl.u32 %v330, 7
      %v332 = vsub.s32 0, %v331
      %v333 = vrot.slane %v328, %v332
      %v334 = vmul.f32 %v274, %v333
      %v335 = vmul.f32 %v275, %v333
      %v336 = vmul.f32 %v277, %v333
      %v337 = vmul.f32 %v278, %v333
      %v338 = vmul.f32 %v280, %v333
      %v339 = vmul.f32 %v281, %v333
      %v340 = vmul.f32 %v283, %v333
      %v341 = vmul.f32 %v284, %v333
      %v342 = vmul.f32 %v286, %v333
      %v343 = vmul.f32 %v287, %v333
      %v344 = vmul.f32 %v289, %v333
      %v345 = vmul.f32 %v290, %v333
      %v346 = vmul.f32 %v292, %v333
      %v347 = vmul.f32 %v293, %v333
      %v348 = vmul.f32 %v295, %v333
      %v349 = vmul.f32 %v296, %v333
      %v350 = vmul.f32 %v298, %v333
      %v351 = vmul.f32 %v299, %v333
      %v352 = vmul.f32 %v301, %v333
      %v353 = vmul.f32 %v302, %v333
      %v354 = vmul.f32 %v304, %v333
      %v355 = vmul.f32 %v305, %v333
      %v356 = vmul.f32 %v307, %v333
      %v357 = vmul.f32 %v308, %v333
      %v358 = vmul.f32 %v310, %v333
      %v359 = vmul.f32 %v311, %v333
      %v360 = vmul.f32 %v313, %v333
      %v361 = vmul.f32 %v314, %v333
      %v362 = vmul.f32 %v316, %v333
      %v363 = vmul.f32 %v317, %v333
      %v364 = vmul.f32 %v319, %v333
      %v365 = vmul.f32 %v320, %v333
      %v366 = vadd.f32 %v334, 0.0
      %v367 = vadd.f32 %v335, 0.0
      %v368 = vadd.f32 %v336, 0.0
      %v369 = vadd.f32 %v337, 0.0
      %v370 = vadd.f32 %v338, 0.0
      %v371 = vadd.f32 %v339, 0.0
      %v372 = vadd.f32 %v340, 0.0
      %v373 = vadd.f32 %v341, 0.0
      %v374 = vadd.f32 %v342, 0.0
      %v375 = vadd.f32 %v343, 0.0
      %v376 = vadd.f32 %v344, 0.0
      %v377 = vadd.f32 %v345, 0.0
      %v378 = vadd.f32 %v346, 0.0
      %v379 = vadd.f32 %v347, 0.0
      %v380 = vadd.f32 %v348, 0.0
      %v381 = vadd.f32 %v349, 0.0
      %v382 = vadd.f32 %v350, 0.0
      %v383 = vadd.f32 %v351, 0.0
      %v384 = vadd.f32 %v352, 0.0
      %v385 = vadd.f32 %v353, 0.0
      %v386 = vadd.f32 %v354, 0.0
      %v387 = vadd.f32 %v355, 0.0
      %v388 = vadd.f32 %v356, 0.0
      %v389 = vadd.f32 %v357, 0.0
      %v390 = vadd.f32 %v358, 0.0
      %v391 = vadd.f32 %v359, 0.0
      %v392 = vadd.f32 %v360, 0.0
      %v393 = vadd.f32 %v361, 0.0
      %v394 = vadd.f32 %v362, 0.0
      %v395 = vadd.f32 %v363, 0.0
      %v396 = vadd.f32 %v364, 0.0
      %v397 = vadd.f32 %v365, 0.0
      %v398 = vlaneseq
      %v399 = vshrl.u32 %v398, 7
      %v400 = vsub.s32 1, %v399
      %v401 = vrot.slane %v328, %v400
      %v402 = vmul.f32 %v274, %v401
      %v403 = vmul.f32 %v275, %v401
      %v404 = vmul.f32 %v276, %v401
      %v405 = vmul.f32 %v277, %v401
      %v406 = vmul.f32 %v278, %v401
      %v407 = vmul.f32 %v279, %v401
      %v408 = vmul.f32 %v280, %v401
      %v409 = vmul.f32 %v281, %v401
      %v410 = vmul.f32 %v282, %v401
      %v411 = vmul.f32 %v283, %v401
      %v412 = vmul.f32 %v284, %v401
      %v413 = vmul.f32 %v285, %v401
      %v414 = vmul.f32 %v286, %v401
      %v415 = vmul.f32 %v287, %v401
      %v416 = vmul.f32 %v288, %v401
      %v417 = vmul.f32 %v289, %v401
      %v418 = vmul.f32 %v290, %v401
      %v419 = vmul.f32 %v291, %v401
      %v420 = vmul.f32 %v292, %v401
      %v421 = vmul.f32 %v293, %v401
      %v422 = vmul.f32 %v294, %v401
      %v423 = vmul.f32 %v295, %v401
      %v424 = vmul.f32 %v296, %v401
      %v425 = vmul.f32 %v297, %v401
      %v426 = vmul.f32 %v298, %v401
      %v427 = vmul.f32 %v299, %v401
      %v428 = vmul.f32 %v300, %v401
      %v429 = vmul.f32 %v301, %v401
      %v430 = vmul.f32 %v302, %v401
      %v431 = vmul.f32 %v303, %v401
      %v432 = vmul.f32 %v304, %v401
      %v433 = vmul.f32 %v305, %v401
      %v434 = vmul.f32 %v306, %v401
      %v435 = vmul.f32 %v307, %v401
      %v436 = vmul.f32 %v308, %v401
      %v437 = vmul.f32 %v309, %v401
      %v438 = vmul.f32 %v310, %v401
      %v439 = vmul.f32 %v311, %v401
      %v440 = vmul.f32 %v312, %v401
      %v441 = vmul.f32 %v313, %v401
      %v442 = vmul.f32 %v314, %v401
      %v443 = vmul.f32 %v315, %v401
      %v444 = vmul.f32 %v316, %v401
      %v445 = vmul.f32 %v317, %v401
      %v446 = vmul.f32 %v318, %v401
      %v447 = vmul.f32 %v319, %v401
      %v448 = vmul.f32 %v320, %v401
      %v449 = vmul.f32 %v321, %v401
      %vm498 = vcmask 1046528
      %v499 = vrot.slane %v402, 1
      %v500 = vrot.slane %v403, 1
      %v501 = vsel %vm498, %v499, %v500
      %v502 = vrot.slane %v404, 1
      %v503 = vsel %vm498, %v500, %v502
      %v504 = vrot.slane %v405, 1
      %v505 = vrot.slane %v406, 1
      %v506 = vsel %vm498, %v504, %v505
      %v507 = vrot.slane %v407, 1
      %v508 = vsel %vm498, %v505, %v507
      %v509 = vrot.slane %v408, 1
      %v510 = vrot.slane %v409, 1
      %v511 = vsel %vm498, %v509, %v510
      %v512 = vrot.slane %v410, 1
      %v513 = vsel %vm498, %v510, %v512
      %v514 = vrot.slane %v411, 1
      %v515 = vrot.slane %v412, 1
      %v516 = vsel %vm498, %v514, %v515
      %v517 = vrot.slane %v413, 1
      %v518 = vsel %vm498, %v515, %v517
      %v519 = vrot.slane %v414, 1
      %v520 = vrot.slane %v415, 1
      %v521 = vsel %vm498, %v519, %v520
      %v522 = vrot.slane %v416, 1
      %v523 = vsel %vm498, %v520, %v522
      %v524 = vrot.slane %v417, 1
      %v525 = vrot.slane %v418, 1
      %v526 = vsel %vm498, %v524, %v525
      %v527 = vrot.slane %v419, 1
      %v528 = vsel %vm498, %v525, %v527
      %v529 = vrot.slane %v420, 1
      %v530 = vrot.slane %v421, 1
      %v531 = vsel %vm498, %v529, %v530
      %v532 = vrot.slane %v422, 1
      %v533 = vsel %vm498, %v530, %v532
      %v534 = vrot.slane %v423, 1
      %v535 = vrot.slane %v424, 1
      %v536 = vsel %vm498, %v534, %v535
      %v537 = vrot.slane %v425, 1
      %v538 = vsel %vm498, %v535, %v537
      %v539 = vrot.slane %v426, 1
      %v540 = vrot.slane %v427, 1
      %v541 = vsel %vm498, %v539, %v540
      %v542 = vrot.slane %v428, 1
      %v543 = vsel %vm498, %v540, %v542
      %v544 = vrot.slane %v429, 1
      %v545 = vrot.slane %v430, 1
      %v546 = vsel %vm498, %v544, %v545
      %v547 = vrot.slane %v431, 1
      %v548 = vsel %vm498, %v545, %v547
      %v549 = vrot.slane %v432, 1
      %v550 = vrot.slane %v433, 1
      %v551 = vsel %vm498, %v549, %v550
      %v552 = vrot.slane %v434, 1
      %v553 = vsel %vm498, %v550, %v552
      %v554 = vrot.slane %v435, 1
      %v555 = vrot.slane %v436, 1
      %v556 = vsel %vm498, %v554, %v555
      %v557 = vrot.slane %v437, 1
      %v558 = vsel %vm498, %v555, %v557
      %v559 = vrot.slane %v438, 1
      %v560 = vrot.slane %v439, 1
      %v561 = vsel %vm498, %v559, %v560
      %v562 = vrot.slane %v440, 1
      %v563 = vsel %vm498, %v560, %v562
      %v564 = vrot.slane %v441, 1
      %v565 = vrot.slane %v442, 1
      %v566 = vsel %vm498, %v564, %v565
      %v567 = vrot.slane %v443, 1
      %v568 = vsel %vm498, %v565, %v567
      %v569 = vrot.slane %v444, 1
      %v570 = vrot.slane %v445, 1
      %v571 = vsel %vm498, %v569, %v570
      %v572 = vrot.slane %v446, 1
      %v573 = vsel %vm498, %v570, %v572
      %v574 = vrot.slane %v447, 1
      %v575 = vrot.slane %v448, 1
      %v576 = vsel %vm498, %v574, %v575
      %v577 = vrot.slane %v449, 1
      %v578 = vsel %vm498, %v575, %v577
      %v611 = vadd.f32 %v366, %v501
      %v612 = vadd.f32 %v367, %v503
      %v613 = vadd.f32 %v368, %v506
      %v614 = vadd.f32 %v369, %v508
      %v615 = vadd.f32 %v370, %v511
      %v616 = vadd.f32 %v371, %v513
      %v617 = vadd.f32 %v372, %v516
      %v618 = vadd.f32 %v373, %v518
      %v619 = vadd.f32 %v374, %v521
      %v620 = vadd.f32 %v375, %v523
      %v621 = vadd.f32 %v376, %v526
      %v622 = vadd.f32 %v377, %v528
      %v623 = vadd.f32 %v378, %v531
      %v624 = vadd.f32 %v379, %v533
      %v625 = vadd.f32 %v380, %v536
      %v626 = vadd.f32 %v381, %v538
      %v627 = vadd.f32 %v382, %v541
      %v628 = vadd.f32 %v383, %v543
      %v629 = vadd.f32 %v384, %v546
      %v630 = vadd.f32 %v385, %v548
      %v631 = vadd.f32 %v386, %v551
      %v632 = vadd.f32 %v387, %v553
      %v633 = vadd.f32 %v388, %v556
      %v634 = vadd.f32 %v389, %v558
      %v635 = vadd.f32 %v390, %v561
      %v636 = vadd.f32 %v391, %v563
      %v637 = vadd.f32 %v392, %v566
      %v638 = vadd.f32 %v393, %v568
      %v639 = vadd.f32 %v394, %v571
      %v640 = vadd.f32 %v395, %v573
      %v641 = vadd.f32 %v396, %v576
      %v642 = vadd.f32 %v397, %v578
      %v643 = vlaneseq
      %v644 = vshrl.u32 %v643, 7
      %v645 = vsub.s32 2, %v644
      %v646 = vrot.slane %v328, %v645
      %v647 = vmul.f32 %v274, %v646
      %v648 = vmul.f32 %v275, %v646
      %v649 = vmul.f32 %v276, %v646
      %v650 = vmul.f32 %v277, %v646
      %v651 = vmul.f32 %v278, %v646
      %v652 = vmul.f32 %v279, %v646
      %v653 = vmul.f32 %v280, %v646
      %v654 = vmul.f32 %v281, %v646
      %v655 = vmul.f32 %v282, %v646
      %v656 = vmul.f32 %v283, %v646
      %v657 = vmul.f32 %v284, %v646
      %v658 = vmul.f32 %v285, %v646
      %v659 = vmul.f32 %v286, %v646
      %v660 = vmul.f32 %v287, %v646
      %v661 = vmul.f32 %v288, %v646
      %v662 = vmul.f32 %v289, %v646
      %v663 = vmul.f32 %v290, %v646
      %v664 = vmul.f32 %v291, %v646
      %v665 = vmul.f32 %v292, %v646
      %v666 = vmul.f32 %v293, %v646
      %v667 = vmul.f32 %v294, %v646
      %v668 = vmul.f32 %v295, %v646
      %v669 = vmul.f32 %v296, %v646
      %v670 = vmul.f32 %v297, %v646
      %v671 = vmul.f32 %v298, %v646
      %v672 = vmul.f32 %v299, %v646
      %v673 = vmul.f32 %v300, %v646
      %v674 = vmul.f32 %v301, %v646
      %v675 = vmul.f32 %v302, %v646
      %v676 = vmul.f32 %v303, %v646
      %v677 = vmul.f32 %v304, %v646
      %v678 = vmul.f32 %v305, %v646
      %v679 = vmul.f32 %v306, %v646
      %v680 = vmul.f32 %v307, %v646
      %v681 = vmul.f32 %v308, %v646
      %v682 = vmul.f32 %v309, %v646
      %v683 = vmul.f32 %v310, %v646
      %v684 = vmul.f32 %v311, %v646
      %v685 = vmul.f32 %v312, %v646
      %v686 = vmul.f32 %v313, %v646
      %v687 = vmul.f32 %v314, %v646
      %v688 = vmul.f32 %v315, %v646
      %v689 = vmul.f32 %v316, %v646
      %v690 = vmul.f32 %v317, %v646
      %v691 = vmul.f32 %v318, %v646
      %v692 = vmul.f32 %v319, %v646
      %v693 = vmul.f32 %v320, %v646
      %v694 = vmul.f32 %v321, %v646
      %vm743 = vcmask 1045504
      %v744 = vrot.slane %v647, 2
      %v745 = vrot.slane %v648, 2
      %v746 = vsel %vm743, %v744, %v745
      %v747 = vrot.slane %v649, 2
      %v748 = vsel %vm743, %v745, %v747
      %v749 = vrot.slane %v650, 2
      %v750 = vrot.slane %v651, 2
      %v751 = vsel %vm743, %v749, %v750
      %v752 = vrot.slane %v652, 2
      %v753 = vsel %vm743, %v750, %v752
      %v754 = vrot.slane %v653, 2
      %v755 = vrot.slane %v654, 2
      %v756 = vsel %vm743, %v754, %v755
      %v757 = vrot.slane %v655, 2
      %v758 = vsel %vm743, %v755, %v757
      %v759 = vrot.slane %v656, 2
      %v760 = vrot.slane %v657, 2
      %v761 = vsel %vm743, %v759, %v760
      %v762 = vrot.slane %v658, 2
      %v763 = vsel %vm743, %v760, %v762
      %v764 = vrot.slane %v659, 2
      %v765 = vrot.slane %v660, 2
      %v766 = vsel %vm743, %v764, %v765
      %v767 = vrot.slane %v661, 2
      %v768 = vsel %vm743, %v765, %v767
      %v769 = vrot.slane %v662, 2
      %v770 = vrot.slane %v663, 2
      %v771 = vsel %vm743, %v769, %v770
      %v772 = vrot.slane %v664, 2
      %v773 = vsel %vm743, %v770, %v772
      %v774 = vrot.slane %v665, 2
      %v775 = vrot.slane %v666, 2
      %v776 = vsel %vm743, %v774, %v775
      %v777 = vrot.slane %v667, 2
      %v778 = vsel %vm743, %v775, %v777
      %v779 = vrot.slane %v668, 2
      %v780 = vrot.slane %v669, 2
      %v781 = vsel %vm743, %v779, %v780
      %v782 = vrot.slane %v670, 2
      %v783 = vsel %vm743, %v780, %v782
      %v784 = vrot.slane %v671, 2
      %v785 = vrot.slane %v672, 2
      %v786 = vsel %vm743, %v784, %v785
      %v787 = vrot.slane %v673, 2
      %v788 = vsel %vm743, %v785, %v787
      %v789 = vrot.slane %v674, 2
      %v790 = vrot.slane %v675, 2
      %v791 = vsel %vm743, %v789, %v790
      %v792 = vrot.slane %v676, 2
      %v793 = vsel %vm743, %v790, %v792
      %v794 = vrot.slane %v677, 2
      %v795 = vrot.slane %v678, 2
      %v796 = vsel %vm743, %v794, %v795
      %v797 = vrot.slane %v679, 2
      %v798 = vsel %vm743, %v795, %v797
      %v799 = vrot.slane %v680, 2
      %v800 = vrot.slane %v681, 2
      %v801 = vsel %vm743, %v799, %v800
      %v802 = vrot.slane %v682, 2
      %v803 = vsel %vm743, %v800, %v802
      %v804 = vrot.slane %v683, 2
      %v805 = vrot.slane %v684, 2
      %v806 = vsel %vm743, %v804, %v805
      %v807 = vrot.slane %v685, 2
      %v808 = vsel %vm743, %v805, %v807
      %v809 = vrot.slane %v686, 2
      %v810 = vrot.slane %v687, 2
      %v811 = vsel %vm743, %v809, %v810
      %v812 = vrot.slane %v688, 2
      %v813 = vsel %vm743, %v810, %v812
      %v814 = vrot.slane %v689, 2
      %v815 = vrot.slane %v690, 2
      %v816 = vsel %vm743, %v814, %v815
      %v817 = vrot.slane %v691, 2
      %v818 = vsel %vm743, %v815, %v817
      %v819 = vrot.slane %v692, 2
      %v820 = vrot.slane %v693, 2
      %v821 = vsel %vm743, %v819, %v820
      %v822 = vrot.slane %v694, 2
      %v823 = vsel %vm743, %v820, %v822
      %v856 = vadd.f32 %v611, %v746
      %v857 = vadd.f32 %v612, %v748
      %v858 = vadd.f32 %v613, %v751
      %v859 = vadd.f32 %v614, %v753
      %v860 = vadd.f32 %v615, %v756
      %v861 = vadd.f32 %v616, %v758
      %v862 = vadd.f32 %v617, %v761
      %v863 = vadd.f32 %v618, %v763
      %v864 = vadd.f32 %v619, %v766
      %v865 = vadd.f32 %v620, %v768
      %v866 = vadd.f32 %v621, %v771
      %v867 = vadd.f32 %v622, %v773
      %v868 = vadd.f32 %v623, %v776
      %v869 = vadd.f32 %v624, %v778
      %v870 = vadd.f32 %v625, %v781
      %v871 = vadd.f32 %v626, %v783
      %v872 = vadd.f32 %v627, %v786
      %v873 = vadd.f32 %v628, %v788
      %v874 = vadd.f32 %v629, %v791
      %v875 = vadd.f32 %v630, %v793
      %v876 = vadd.f32 %v631, %v796
      %v877 = vadd.f32 %v632, %v798
      %v878 = vadd.f32 %v633, %v801
      %v879 = vadd.f32 %v634, %v803
      %v880 = vadd.f32 %v635, %v806
      %v881 = vadd.f32 %v636, %v808
      %v882 = vadd.f32 %v637, %v811
      %v883 = vadd.f32 %v638, %v813
      %v884 = vadd.f32 %v639, %v816
      %v885 = vadd.f32 %v640, %v818
      %v886 = vadd.f32 %v641, %v821
      %v887 = vadd.f32 %v642, %v823
      %v888 = vlaneseq
      %v889 = vshrl.u32 %v888, 7
      %v890 = vsub.s32 3, %v889
      %v891 = vrot.slane %v328, %v890
      %v892 = vmul.f32 %v277, %v891
      %v893 = vmul.f32 %v278, %v891
      %v894 = vmul.f32 %v280, %v891
      %v895 = vmul.f32 %v281, %v891
      %v896 = vmul.f32 %v283, %v891
      %v897 = vmul.f32 %v284, %v891
      %v898 = vmul.f32 %v286, %v891
      %v899 = vmul.f32 %v287, %v891
      %v900 = vmul.f32 %v289, %v891
      %v901 = vmul.f32 %v290, %v891
      %v902 = vmul.f32 %v292, %v891
      %v903 = vmul.f32 %v293, %v891
      %v904 = vmul.f32 %v295, %v891
      %v905 = vmul.f32 %v296, %v891
      %v906 = vmul.f32 %v298, %v891
      %v907 = vmul.f32 %v299, %v891
      %v908 = vmul.f32 %v301, %v891
      %v909 = vmul.f32 %v302, %v891
      %v910 = vmul.f32 %v304, %v891
      %v911 = vmul.f32 %v305, %v891
      %v912 = vmul.f32 %v307, %v891
      %v913 = vmul.f32 %v308, %v891
      %v914 = vmul.f32 %v310, %v891
      %v915 = vmul.f32 %v311, %v891
      %v916 = vmul.f32 %v313, %v891
      %v917 = vmul.f32 %v314, %v891
      %v918 = vmul.f32 %v316, %v891
      %v919 = vmul.f32 %v317, %v891
      %v920 = vmul.f32 %v319, %v891
      %v921 = vmul.f32 %v320, %v891
      %v922 = vmul.f32 %v322, %v891
      %v923 = vmul.f32 %v323, %v891
      %v924 = vadd.f32 %v856, %v892
      %v925 = vadd.f32 %v857, %v893
      %v926 = vadd.f32 %v858, %v894
      %v927 = vadd.f32 %v859, %v895
      %v928 = vadd.f32 %v860, %v896
      %v929 = vadd.f32 %v861, %v897
      %v930 = vadd.f32 %v862, %v898
      %v931 = vadd.f32 %v863, %v899
      %v932 = vadd.f32 %v864, %v900
      %v933 = vadd.f32 %v865, %v901
      %v934 = vadd.f32 %v866, %v902
      %v935 = vadd.f32 %v867, %v903
      %v936 = vadd.f32 %v868, %v904
      %v937 = vadd.f32 %v869, %v905
      %v938 = vadd.f32 %v870, %v906
      %v939 = vadd.f32 %v871, %v907
      %v940 = vadd.f32 %v872, %v908
      %v941 = vadd.f32 %v873, %v909
      %v942 = vadd.f32 %v874, %v910
      %v943 = vadd.f32 %v875, %v911
      %v944 = vadd.f32 %v876, %v912
      %v945 = vadd.f32 %v877, %v913
      %v946 = vadd.f32 %v878, %v914
      %v947 = vadd.f32 %v879, %v915
      %v948 = vadd.f32 %v880, %v916
      %v949 = vadd.f32 %v881, %v917
      %v950 = vadd.f32 %v882, %v918
      %v951 = vadd.f32 %v883, %v919
      %v952 = vadd.f32 %v884, %v920
      %v953 = vadd.f32 %v885, %v921
      %v954 = vadd.f32 %v886, %v922
      %v955 = vadd.f32 %v887, %v923
      %v956 = vlaneseq
      %v957 = vshrl.u32 %v956, 7
      %v958 = vsub.s32 4, %v957
      %v959 = vrot.slane %v328, %v958
      %v960 = vmul.f32 %v277, %v959
      %v961 = vmul.f32 %v278, %v959
      %v962 = vmul.f32 %v279, %v959
      %v963 = vmul.f32 %v280, %v959
      %v964 = vmul.f32 %v281, %v959
      %v965 = vmul.f32 %v282, %v959
      %v966 = vmul.f32 %v283, %v959
      %v967 = vmul.f32 %v284, %v959
      %v968 = vmul.f32 %v285, %v959
      %v969 = vmul.f32 %v286, %v959
      %v970 = vmul.f32 %v287, %v959
      %v971 = vmul.f32 %v288, %v959
      %v972 = vmul.f32 %v289, %v959
      %v973 = vmul.f32 %v290, %v959
      %v974 = vmul.f32 %v291, %v959
      %v975 = vmul.f32 %v292, %v959
      %v976 = vmul.f32 %v293, %v959
      %v977 = vmul.f32 %v294, %v959
      %v978 = vmul.f32 %v295, %v959
      %v979 = vmul.f32 %v296, %v959
      %v980 = vmul.f32 %v297, %v959
      %v981 = vmul.f32 %v298, %v959
      %v982 = vmul.f32 %v299, %v959
      %v983 = vmul.f32 %v300, %v959
      %v984 = vmul.f32 %v301, %v959
      %v985 = vmul.f32 %v302, %v959
      %v986 = vmul.f32 %v303, %v959
      %v987 = vmul.f32 %v304, %v959
      %v988 = vmul.f32 %v305, %v959
      %v989 = vmul.f32 %v306, %v959
      %v990 = vmul.f32 %v307, %v959
      %v991 = vmul.f32 %v308, %v959
      %v992 = vmul.f32 %v309, %v959
      %v993 = vmul.f32 %v310, %v959
      %v994 = vmul.f32 %v311, %v959
      %v995 = vmul.f32 %v312, %v959
      %v996 = vmul.f32 %v313, %v959
      %v997 = vmul.f32 %v314, %v959
      %v998 = vmul.f32 %v315, %v959
      %v999 = vmul.f32 %v316, %v959
      %v1000 = vmul.f32 %v317, %v959
      %v1001 = vmul.f32 %v318, %v959
      %v1002 = vmul.f32 %v319, %v959
      %v1003 = vmul.f32 %v320, %v959
      %v1004 = vmul.f32 %v321, %v959
      %v1005 = vmul.f32 %v322, %v959
      %v1006 = vmul.f32 %v323, %v959
      %v1007 = vmul.f32 %v324, %v959
      %v1056 = vrot.slane %v960, 1
      %v1057 = vrot.slane %v961, 1
      %v1058 = vsel %vm498, %v1056, %v1057
      %v1059 = vrot.slane %v962, 1
      %v1060 = vsel %vm498, %v1057, %v1059
      %v1061 = vrot.slane %v963, 1
      %v1062 = vrot.slane %v964, 1
      %v1063 = vsel %vm498, %v1061, %v1062
      %v1064 = vrot.slane %v965, 1
      %v1065 = vsel %vm498, %v1062, %v1064
      %v1066 = vrot.slane %v966, 1
      %v1067 = vrot.slane %v967, 1
      %v1068 = vsel %vm498, %v1066, %v1067
      %v1069 = vrot.slane %v968, 1
      %v1070 = vsel %vm498, %v1067, %v1069
      %v1071 = vrot.slane %v969, 1
      %v1072 = vrot.slane %v970, 1
      %v1073 = vsel %vm498, %v1071, %v1072
      %v1074 = vrot.slane %v971, 1
      %v1075 = vsel %vm498, %v1072, %v1074
      %v1076 = vrot.slane %v972, 1
      %v1077 = vrot.slane %v973, 1
      %v1078 = vsel %vm498, %v1076, %v1077
      %v1079 = vrot.slane %v974, 1
      %v1080 = vsel %vm498, %v1077, %v1079
      %v1081 = vrot.slane %v975, 1
      %v1082 = vrot.slane %v976, 1
      %v1083 = vsel %vm498, %v1081, %v1082
      %v1084 = vrot.slane %v977, 1
      %v1085 = vsel %vm498, %v1082, %v1084
      %v1086 = vrot.slane %v978, 1
      %v1087 = vrot.slane %v979, 1
      %v1088 = vsel %vm498, %v1086, %v1087
      %v1089 = vrot.slane %v980, 1
      %v1090 = vsel %vm498, %v1087, %v1089
      %v1091 = vrot.slane %v981, 1
      %v1092 = vrot.slane %v982, 1
      %v1093 = vsel %vm498, %v1091, %v1092
      %v1094 = vrot.slane %v983, 1
      %v1095 = vsel %vm498, %v1092, %v1094
      %v1096 = vrot.slane %v984, 1
      %v1097 = vrot.slane %v985, 1
      %v1098 = vsel %vm498, %v1096, %v1097
      %v1099 = vrot.slane %v986, 1
      %v1100 = vsel %vm498, %v1097, %v1099
      %v1101 = vrot.slane %v987, 1
      %v1102 = vrot.slane %v988, 1
      %v1103 = vsel %vm498, %v1101, %v1102
      %v1104 = vrot.slane %v989, 1
      %v1105 = vsel %vm498, %v1102, %v1104
      %v1106 = vrot.slane %v990, 1
      %v1107 = vrot.slane %v991, 1
      %v1108 = vsel %vm498, %v1106, %v1107
      %v1109 = vrot.slane %v992, 1
      %v1110 = vsel %vm498, %v1107, %v1109
      %v1111 = vrot.slane %v993, 1
      %v1112 = vrot.slane %v994, 1
      %v1113 = vsel %vm498, %v1111, %v1112
      %v1114 = vrot.slane %v995, 1
      %v1115 = vsel %vm498, %v1112, %v1114
      %v1116 = vrot.slane %v996, 1
      %v1117 = vrot.slane %v997, 1
      %v1118 = vsel %vm498, %v1116, %v1117
      %v1119 = vrot.slane %v998, 1
      %v1120 = vsel %vm498, %v1117, %v1119
      %v1121 = vrot.slane %v999, 1
      %v1122 = vrot.slane %v1000, 1
      %v1123 = vsel %vm498, %v1121, %v1122
      %v1124 = vrot.slane %v1001, 1
      %v1125 = vsel %vm498, %v1122, %v1124
      %v1126 = vrot.slane %v1002, 1
      %v1127 = vrot.slane %v1003, 1
      %v1128 = vsel %vm498, %v1126, %v1127
      %v1129 = vrot.slane %v1004, 1
      %v1130 = vsel %vm498, %v1127, %v1129
      %v1131 = vrot.slane %v1005, 1
      %v1132 = vrot.slane %v1006, 1
      %v1133 = vsel %vm498, %v1131, %v1132
      %v1134 = vrot.slane %v1007, 1
      %v1135 = vsel %vm498, %v1132, %v1134
      %v1168 = vadd.f32 %v924, %v1058
      %v1169 = vadd.f32 %v925, %v1060
      %v1170 = vadd.f32 %v926, %v1063
      %v1171 = vadd.f32 %v927, %v1065
      %v1172 = vadd.f32 %v928, %v1068
      %v1173 = vadd.f32 %v929, %v1070
      %v1174 = vadd.f32 %v930, %v1073
      %v1175 = vadd.f32 %v931, %v1075
      %v1176 = vadd.f32 %v932, %v1078
      %v1177 = vadd.f32 %v933, %v1080
      %v1178 = vadd.f32 %v934, %v1083
      %v1179 = vadd.f32 %v935, %v1085
      %v1180 = vadd.f32 %v936, %v1088
      %v1181 = vadd.f32 %v937, %v1090
      %v1182 = vadd.f32 %v938, %v1093
      %v1183 = vadd.f32 %v939, %v1095
      %v1184 = vadd.f32 %v940, %v1098
      %v1185 = vadd.f32 %v941, %v1100
      %v1186 = vadd.f32 %v942, %v1103
      %v1187 = vadd.f32 %v943, %v1105
      %v1188 = vadd.f32 %v944, %v1108
      %v1189 = vadd.f32 %v945, %v1110
      %v1190 = vadd.f32 %v946, %v1113
      %v1191 = vadd.f32 %v947, %v1115
      %v1192 = vadd.f32 %v948, %v1118
      %v1193 = vadd.f32 %v949, %v1120
      %v1194 = vadd.f32 %v950, %v1123
      %v1195 = vadd.f32 %v951, %v1125
      %v1196 = vadd.f32 %v952, %v1128
      %v1197 = vadd.f32 %v953, %v1130
      %v1198 = vadd.f32 %v954, %v1133
      %v1199 = vadd.f32 %v955, %v1135
      %v1200 = vlaneseq
      %v1201 = vshrl.u32 %v1200, 7
      %v1202 = vsub.s32 5, %v1201
      %v1203 = vrot.slane %v328, %v1202
      %v1204 = vmul.f32 %v277, %v1203
      %v1205 = vmul.f32 %v278, %v1203
      %v1206 = vmul.f32 %v279, %v1203
      %v1207 = vmul.f32 %v280, %v1203
      %v1208 = vmul.f32 %v281, %v1203
      %v1209 = vmul.f32 %v282, %v1203
      %v1210 = vmul.f32 %v283, %v1203
      %v1211 = vmul.f32 %v284, %v1203
      %v1212 = vmul.f32 %v285, %v1203
      %v1213 = vmul.f32 %v286, %v1203
      %v1214 = vmul.f32 %v287, %v1203
      %v1215 = vmul.f32 %v288, %v1203
      %v1216 = vmul.f32 %v289, %v1203
      %v1217 = vmul.f32 %v290, %v1203
      %v1218 = vmul.f32 %v291, %v1203
      %v1219 = vmul.f32 %v292, %v1203
      %v1220 = vmul.f32 %v293, %v1203
      %v1221 = vmul.f32 %v294, %v1203
      %v1222 = vmul.f32 %v295, %v1203
      %v1223 = vmul.f32 %v296, %v1203
      %v1224 = vmul.f32 %v297, %v1203
      %v1225 = vmul.f32 %v298, %v1203
      %v1226 = vmul.f32 %v299, %v1203
      %v1227 = vmul.f32 %v300, %v1203
      %v1228 = vmul.f32 %v301, %v1203
      %v1229 = vmul.f32 %v302, %v1203
      %v1230 = vmul.f32 %v303, %v1203
      %v1231 = vmul.f32 %v304, %v1203
      %v1232 = vmul.f32 %v305, %v1203
      %v1233 = vmul.f32 %v306, %v1203
      %v1234 = vmul.f32 %v307, %v1203
      %v1235 = vmul.f32 %v308, %v1203
      %v1236 = vmul.f32 %v309, %v1203
      %v1237 = vmul.f32 %v310, %v1203
      %v1238 = vmul.f32 %v311, %v1203
      %v1239 = vmul.f32 %v312, %v1203
      %v1240 = vmul.f32 %v313, %v1203
      %v1241 = vmul.f32 %v314, %v1203
      %v1242 = vmul.f32 %v315, %v1203
      %v1243 = vmul.f32 %v316, %v1203
      %v1244 = vmul.f32 %v317, %v1203
      %v1245 = vmul.f32 %v318, %v1203
      %v1246 = vmul.f32 %v319, %v1203
      %v1247 = vmul.f32 %v320, %v1203
      %v1248 = vmul.f32 %v321, %v1203
      %v1249 = vmul.f32 %v322, %v1203
      %v1250 = vmul.f32 %v323, %v1203
      %v1251 = vmul.f32 %v324, %v1203
      %v1300 = vrot.slane %v1204, 2
      %v1301 = vrot.slane %v1205, 2
      %v1302 = vsel %vm743, %v1300, %v1301
      %v1303 = vrot.slane %v1206, 2
      %v1304 = vsel %vm743, %v1301, %v1303
      %v1305 = vrot.slane %v1207, 2
      %v1306 = vrot.slane %v1208, 2
      %v1307 = vsel %vm743, %v1305, %v1306
      %v1308 = vrot.slane %v1209, 2
      %v1309 = vsel %vm743, %v1306, %v1308
      %v1310 = vrot.slane %v1210, 2
      %v1311 = vrot.slane %v1211, 2
      %v1312 = vsel %vm743, %v1310, %v1311
      %v1313 = vrot.slane %v1212, 2
      %v1314 = vsel %vm743, %v1311, %v1313
      %v1315 = vrot.slane %v1213, 2
      %v1316 = vrot.slane %v1214, 2
      %v1317 = vsel %vm743, %v1315, %v1316
      %v1318 = vrot.slane %v1215, 2
      %v1319 = vsel %vm743, %v1316, %v1318
      %v1320 = vrot.slane %v1216, 2
      %v1321 = vrot.slane %v1217, 2
      %v1322 = vsel %vm743, %v1320, %v1321
      %v1323 = vrot.slane %v1218, 2
      %v1324 = vsel %vm743, %v1321, %v1323
      %v1325 = vrot.slane %v1219, 2
      %v1326 = vrot.slane %v1220, 2
      %v1327 = vsel %vm743, %v1325, %v1326
      %v1328 = vrot.slane %v1221, 2
      %v1329 = vsel %vm743, %v1326, %v1328
      %v1330 = vrot.slane %v1222, 2
      %v1331 = vrot.slane %v1223, 2
      %v1332 = vsel %vm743, %v1330, %v1331
      %v1333 = vrot.slane %v1224, 2
      %v1334 = vsel %vm743, %v1331, %v1333
      %v1335 = vrot.slane %v1225, 2
      %v1336 = vrot.slane %v1226, 2
      %v1337 = vsel %vm743, %v1335, %v1336
      %v1338 = vrot.slane %v1227, 2
      %v1339 = vsel %vm743, %v1336, %v1338
      %v1340 = vrot.slane %v1228, 2
      %v1341 = vrot.slane %v1229, 2
      %v1342 = vsel %vm743, %v1340, %v1341
      %v1343 = vrot.slane %v1230, 2
      %v1344 = vsel %vm743, %v1341, %v1343
      %v1345 = vrot.slane %v1231, 2
      %v1346 = vrot.slane %v1232, 2
      %v1347 = vsel %vm743, %v1345, %v1346
      %v1348 = vrot.slane %v1233, 2
      %v1349 = vsel %vm743, %v1346, %v1348
      %v1350 = vrot.slane %v1234, 2
      %v1351 = vrot.slane %v1235, 2
      %v1352 = vsel %vm743, %v1350, %v1351
      %v1353 = vrot.slane %v1236, 2
      %v1354 = vsel %vm743, %v1351, %v1353
      %v1355 = vrot.slane %v1237, 2
      %v1356 = vrot.slane %v1238, 2
      %v1357 = vsel %vm743, %v1355, %v1356
      %v1358 = vrot.slane %v1239, 2
      %v1359 = vsel %vm743, %v1356, %v1358
      %v1360 = vrot.slane %v1240, 2
      %v1361 = vrot.slane %v1241, 2
      %v1362 = vsel %vm743, %v1360, %v1361
      %v1363 = vrot.slane %v1242, 2
      %v1364 = vsel %vm743, %v1361, %v1363
      %v1365 = vrot.slane %v1243, 2
      %v1366 = vrot.slane %v1244, 2
      %v1367 = vsel %vm743, %v1365, %v1366
      %v1368 = vrot.slane %v1245, 2
      %v1369 = vsel %vm743, %v1366, %v1368
      %v1370 = vrot.slane %v1246, 2
      %v1371 = vrot.slane %v1247, 2
      %v1372 = vsel %vm743, %v1370, %v1371
      %v1373 = vrot.slane %v1248, 2
      %v1374 = vsel %vm743, %v1371, %v1373
      %v1375 = vrot.slane %v1249, 2
      %v1376 = vrot.slane %v1250, 2
      %v1377 = vsel %vm743, %v1375, %v1376
      %v1378 = vrot.slane %v1251, 2
      %v1379 = vsel %vm743, %v1376, %v1378
      %v1412 = vadd.f32 %v1168, %v1302
      %v1413 = vadd.f32 %v1169, %v1304
      %v1414 = vadd.f32 %v1170, %v1307
      %v1415 = vadd.f32 %v1171, %v1309
      %v1416 = vadd.f32 %v1172, %v1312
      %v1417 = vadd.f32 %v1173, %v1314
      %v1418 = vadd.f32 %v1174, %v1317
      %v1419 = vadd.f32 %v1175, %v1319
      %v1420 = vadd.f32 %v1176, %v1322
      %v1421 = vadd.f32 %v1177, %v1324
      %v1422 = vadd.f32 %v1178, %v1327
      %v1423 = vadd.f32 %v1179, %v1329
      %v1424 = vadd.f32 %v1180, %v1332
      %v1425 = vadd.f32 %v1181, %v1334
      %v1426 = vadd.f32 %v1182, %v1337
      %v1427 = vadd.f32 %v1183, %v1339
      %v1428 = vadd.f32 %v1184, %v1342
      %v1429 = vadd.f32 %v1185, %v1344
      %v1430 = vadd.f32 %v1186, %v1347
      %v1431 = vadd.f32 %v1187, %v1349
      %v1432 = vadd.f32 %v1188, %v1352
      %v1433 = vadd.f32 %v1189, %v1354
      %v1434 = vadd.f32 %v1190, %v1357
      %v1435 = vadd.f32 %v1191, %v1359
      %v1436 = vadd.f32 %v1192, %v1362
      %v1437 = vadd.f32 %v1193, %v1364
      %v1438 = vadd.f32 %v1194, %v1367
      %v1439 = vadd.f32 %v1195, %v1369
      %v1440 = vadd.f32 %v1196, %v1372
      %v1441 = vadd.f32 %v1197, %v1374
      %v1442 = vadd.f32 %v1198, %v1377
      %v1443 = vadd.f32 %v1199, %v1379
      %v1444 = vlaneseq
      %v1445 = vshrl.u32 %v1444, 7
      %v1446 = vsub.s32 6, %v1445
      %v1447 = vrot.slane %v328, %v1446
      %v1448 = vmul.f32 %v280, %v1447
      %v1449 = vmul.f32 %v281, %v1447
      %v1450 = vmul.f32 %v283, %v1447
      %v1451 = vmul.f32 %v284, %v1447
      %v1452 = vmul.f32 %v286, %v1447
      %v1453 = vmul.f32 %v287, %v1447
      %v1454 = vmul.f32 %v289, %v1447
      %v1455 = vmul.f32 %v290, %v1447
      %v1456 = vmul.f32 %v292, %v1447
      %v1457 = vmul.f32 %v293, %v1447
      %v1458 = vmul.f32 %v295, %v1447
      %v1459 = vmul.f32 %v296, %v1447
      %v1460 = vmul.f32 %v298, %v1447
      %v1461 = vmul.f32 %v299, %v1447
      %v1462 = vmul.f32 %v301, %v1447
      %v1463 = vmul.f32 %v302, %v1447
      %v1464 = vmul.f32 %v304, %v1447
      %v1465 = vmul.f32 %v305, %v1447
      %v1466 = vmul.f32 %v307, %v1447
      %v1467 = vmul.f32 %v308, %v1447
      %v1468 = vmul.f32 %v310, %v1447
      %v1469 = vmul.f32 %v311, %v1447
      %v1470 = vmul.f32 %v313, %v1447
      %v1471 = vmul.f32 %v314, %v1447
      %v1472 = vmul.f32 %v316, %v1447
      %v1473 = vmul.f32 %v317, %v1447
      %v1474 = vmul.f32 %v319, %v1447
      %v1475 = vmul.f32 %v320, %v1447
      %v1476 = vmul.f32 %v322, %v1447
      %v1477 = vmul.f32 %v323, %v1447
      %v1478 = vmul.f32 %v325, %v1447
      %v1479 = vmul.f32 %v326, %v1447
      %v1480 = vadd.f32 %v1412, %v1448
      %v1481 = vadd.f32 %v1413, %v1449
      %v1482 = vadd.f32 %v1414, %v1450
      %v1483 = vadd.f32 %v1415, %v1451
      %v1484 = vadd.f32 %v1416, %v1452
      %v1485 = vadd.f32 %v1417, %v1453
      %v1486 = vadd.f32 %v1418, %v1454
      %v1487 = vadd.f32 %v1419, %v1455
      %v1488 = vadd.f32 %v1420, %v1456
      %v1489 = vadd.f32 %v1421, %v1457
      %v1490 = vadd.f32 %v1422, %v1458
      %v1491 = vadd.f32 %v1423, %v1459
      %v1492 = vadd.f32 %v1424, %v1460
      %v1493 = vadd.f32 %v1425, %v1461
      %v1494 = vadd.f32 %v1426, %v1462
      %v1495 = vadd.f32 %v1427, %v1463
      %v1496 = vadd.f32 %v1428, %v1464
      %v1497 = vadd.f32 %v1429, %v1465
      %v1498 = vadd.f32 %v1430, %v1466
      %v1499 = vadd.f32 %v1431, %v1467
      %v1500 = vadd.f32 %v1432, %v1468
      %v1501 = vadd.f32 %v1433, %v1469
      %v1502 = vadd.f32 %v1434, %v1470
      %v1503 = vadd.f32 %v1435, %v1471
      %v1504 = vadd.f32 %v1436, %v1472
      %v1505 = vadd.f32 %v1437, %v1473
      %v1506 = vadd.f32 %v1438, %v1474
      %v1507 = vadd.f32 %v1439, %v1475
      %v1508 = vadd.f32 %v1440, %v1476
      %v1509 = vadd.f32 %v1441, %v1477
      %v1510 = vadd.f32 %v1442, %v1478
      %v1511 = vadd.f32 %v1443, %v1479
      %v1512 = vlaneseq
      %v1513 = vshrl.u32 %v1512, 7
      %v1514 = vsub.s32 7, %v1513
      %v1515 = vrot.slane %v328, %v1514
      %v1516 = vmul.f32 %v280, %v1515
      %v1517 = vmul.f32 %v281, %v1515
      %v1518 = vmul.f32 %v282, %v1515
      %v1519 = vmul.f32 %v283, %v1515
      %v1520 = vmul.f32 %v284, %v1515
      %v1521 = vmul.f32 %v285, %v1515
      %v1522 = vmul.f32 %v286, %v1515
      %v1523 = vmul.f32 %v287, %v1515
      %v1524 = vmul.f32 %v288, %v1515
      %v1525 = vmul.f32 %v289, %v1515
      %v1526 = vmul.f32 %v290, %v1515
      %v1527 = vmul.f32 %v291, %v1515
      %v1528 = vmul.f32 %v292, %v1515
      %v1529 = vmul.f32 %v293, %v1515
      %v1530 = vmul.f32 %v294, %v1515
      %v1531 = vmul.f32 %v295, %v1515
      %v1532 = vmul.f32 %v296, %v1515
      %v1533 = vmul.f32 %v297, %v1515
      %v1534 = vmul.f32 %v298, %v1515
      %v1535 = vmul.f32 %v299, %v1515
      %v1536 = vmul.f32 %v300, %v1515
      %v1537 = vmul.f32 %v301, %v1515
      %v1538 = vmul.f32 %v302, %v1515
      %v1539 = vmul.f32 %v303, %v1515
      %v1540 = vmul.f32 %v304, %v1515
      %v1541 = vmul.f32 %v305, %v1515
      %v1542 = vmul.f32 %v306, %v1515
      %v1543 = vmul.f32 %v307, %v1515
      %v1544 = vmul.f32 %v308, %v1515
      %v1545 = vmul.f32 %v309, %v1515
      %v1546 = vmul.f32 %v310, %v1515
      %v1547 = vmul.f32 %v311, %v1515
      %v1548 = vmul.f32 %v312, %v1515
      %v1549 = vmul.f32 %v313, %v1515
      %v1550 = vmul.f32 %v314, %v1515
      %v1551 = vmul.f32 %v315, %v1515
      %v1552 = vmul.f32 %v316, %v1515
      %v1553 = vmul.f32 %v317, %v1515
      %v1554 = vmul.f32 %v318, %v1515
      %v1555 = vmul.f32 %v319, %v1515
      %v1556 = vmul.f32 %v320, %v1515
      %v1557 = vmul.f32 %v321, %v1515
      %v1558 = vmul.f32 %v322, %v1515
      %v1559 = vmul.f32 %v323, %v1515
      %v1560 = vmul.f32 %v324, %v1515
      %v1561 = vmul.f32 %v325, %v1515
      %v1562 = vmul.f32 %v326, %v1515
      %v1563 = vmul.f32 %v327, %v1515
      %v1612 = vrot.slane %v1516, 1
      %v1613 = vrot.slane %v1517, 1
      %v1614 = vsel %vm498, %v1612, %v1613
      %v1615 = vrot.slane %v1518, 1
      %v1616 = vsel %vm498, %v1613, %v1615
      %v1617 = vrot.slane %v1519, 1
      %v1618 = vrot.slane %v1520, 1
      %v1619 = vsel %vm498, %v1617, %v1618
      %v1620 = vrot.slane %v1521, 1
      %v1621 = vsel %vm498, %v1618, %v1620
      %v1622 = vrot.slane %v1522, 1
      %v1623 = vrot.slane %v1523, 1
      %v1624 = vsel %vm498, %v1622, %v1623
      %v1625 = vrot.slane %v1524, 1
      %v1626 = vsel %vm498, %v1623, %v1625
      %v1627 = vrot.slane %v1525, 1
      %v1628 = vrot.slane %v1526, 1
      %v1629 = vsel %vm498, %v1627, %v1628
      %v1630 = vrot.slane %v1527, 1
      %v1631 = vsel %vm498, %v1628, %v1630
      %v1632 = vrot.slane %v1528, 1
      %v1633 = vrot.slane %v1529, 1
      %v1634 = vsel %vm498, %v1632, %v1633
      %v1635 = vrot.slane %v1530, 1
      %v1636 = vsel %vm498, %v1633, %v1635
      %v1637 = vrot.slane %v1531, 1
      %v1638 = vrot.slane %v1532, 1
      %v1639 = vsel %vm498, %v1637, %v1638
      %v1640 = vrot.slane %v1533, 1
      %v1641 = vsel %vm498, %v1638, %v1640
      %v1642 = vrot.slane %v1534, 1
      %v1643 = vrot.slane %v1535, 1
      %v1644 = vsel %vm498, %v1642, %v1643
      %v1645 = vrot.slane %v1536, 1
      %v1646 = vsel %vm498, %v1643, %v1645
      %v1647 = vrot.slane %v1537, 1
      %v1648 = vrot.slane %v1538, 1
      %v1649 = vsel %vm498, %v1647, %v1648
      %v1650 = vrot.slane %v1539, 1
      %v1651 = vsel %vm498, %v1648, %v1650
      %v1652 = vrot.slane %v1540, 1
      %v1653 = vrot.slane %v1541, 1
      %v1654 = vsel %vm498, %v1652, %v1653
      %v1655 = vrot.slane %v1542, 1
      %v1656 = vsel %vm498, %v1653, %v1655
      %v1657 = vrot.slane %v1543, 1
      %v1658 = vrot.slane %v1544, 1
      %v1659 = vsel %vm498, %v1657, %v1658
      %v1660 = vrot.slane %v1545, 1
      %v1661 = vsel %vm498, %v1658, %v1660
      %v1662 = vrot.slane %v1546, 1
      %v1663 = vrot.slane %v1547, 1
      %v1664 = vsel %vm498, %v1662, %v1663
      %v1665 = vrot.slane %v1548, 1
      %v1666 = vsel %vm498, %v1663, %v1665
      %v1667 = vrot.slane %v1549, 1
      %v1668 = vrot.slane %v1550, 1
      %v1669 = vsel %vm498, %v1667, %v1668
      %v1670 = vrot.slane %v1551, 1
      %v1671 = vsel %vm498, %v1668, %v1670
      %v1672 = vrot.slane %v1552, 1
      %v1673 = vrot.slane %v1553, 1
      %v1674 = vsel %vm498, %v1672, %v1673
      %v1675 = vrot.slane %v1554, 1
      %v1676 = vsel %vm498, %v1673, %v1675
      %v1677 = vrot.slane %v1555, 1
      %v1678 = vrot.slane %v1556, 1
      %v1679 = vsel %vm498, %v1677, %v1678
      %v1680 = vrot.slane %v1557, 1
      %v1681 = vsel %vm498, %v1678, %v1680
      %v1682 = vrot.slane %v1558, 1
      %v1683 = vrot.slane %v1559, 1
      %v1684 = vsel %vm498, %v1682, %v1683
      %v1685 = vrot.slane %v1560, 1
      %v1686 = vsel %vm498, %v1683, %v1685
      %v1687 = vrot.slane %v1561, 1
      %v1688 = vrot.slane %v1562, 1
      %v1689 = vsel %vm498, %v1687, %v1688
      %v1690 = vrot.slane %v1563, 1
      %v1691 = vsel %vm498, %v1688, %v1690
      %v1724 = vadd.f32 %v1480, %v1614
      %v1725 = vadd.f32 %v1481, %v1616
      %v1726 = vadd.f32 %v1482, %v1619
      %v1727 = vadd.f32 %v1483, %v1621
      %v1728 = vadd.f32 %v1484, %v1624
      %v1729 = vadd.f32 %v1485, %v1626
      %v1730 = vadd.f32 %v1486, %v1629
      %v1731 = vadd.f32 %v1487, %v1631
      %v1732 = vadd.f32 %v1488, %v1634
      %v1733 = vadd.f32 %v1489, %v1636
      %v1734 = vadd.f32 %v1490, %v1639
      %v1735 = vadd.f32 %v1491, %v1641
      %v1736 = vadd.f32 %v1492, %v1644
      %v1737 = vadd.f32 %v1493, %v1646
      %v1738 = vadd.f32 %v1494, %v1649
      %v1739 = vadd.f32 %v1495, %v1651
      %v1740 = vadd.f32 %v1496, %v1654
      %v1741 = vadd.f32 %v1497, %v1656
      %v1742 = vadd.f32 %v1498, %v1659
      %v1743 = vadd.f32 %v1499, %v1661
      %v1744 = vadd.f32 %v1500, %v1664
      %v1745 = vadd.f32 %v1501, %v1666
      %v1746 = vadd.f32 %v1502, %v1669
      %v1747 = vadd.f32 %v1503, %v1671
      %v1748 = vadd.f32 %v1504, %v1674
      %v1749 = vadd.f32 %v1505, %v1676
      %v1750 = vadd.f32 %v1506, %v1679
      %v1751 = vadd.f32 %v1507, %v1681
      %v1752 = vadd.f32 %v1508, %v1684
      %v1753 = vadd.f32 %v1509, %v1686
      %v1754 = vadd.f32 %v1510, %v1689
      %v1755 = vadd.f32 %v1511, %v1691
      %v1756 = vlaneseq
      %v1757 = vshrl.u32 %v1756, 7
      %v1758 = vsub.s32 0, %v1757
      %v1759 = vrot.slane %v329, %v1758
      %v1760 = vmul.f32 %v280, %v1759
      %v1761 = vmul.f32 %v281, %v1759
      %v1762 = vmul.f32 %v282, %v1759
      %v1763 = vmul.f32 %v283, %v1759
      %v1764 = vmul.f32 %v284, %v1759
      %v1765 = vmul.f32 %v285, %v1759
      %v1766 = vmul.f32 %v286, %v1759
      %v1767 = vmul.f32 %v287, %v1759
      %v1768 = vmul.f32 %v288, %v1759
      %v1769 = vmul.f32 %v289, %v1759
      %v1770 = vmul.f32 %v290, %v1759
      %v1771 = vmul.f32 %v291, %v1759
      %v1772 = vmul.f32 %v292, %v1759
      %v1773 = vmul.f32 %v293, %v1759
      %v1774 = vmul.f32 %v294, %v1759
      %v1775 = vmul.f32 %v295, %v1759
      %v1776 = vmul.f32 %v296, %v1759
      %v1777 = vmul.f32 %v297, %v1759
      %v1778 = vmul.f32 %v298, %v1759
      %v1779 = vmul.f32 %v299, %v1759
      %v1780 = vmul.f32 %v300, %v1759
      %v1781 = vmul.f32 %v301, %v1759
      %v1782 = vmul.f32 %v302, %v1759
      %v1783 = vmul.f32 %v303, %v1759
      %v1784 = vmul.f32 %v304, %v1759
      %v1785 = vmul.f32 %v305, %v1759
      %v1786 = vmul.f32 %v306, %v1759
      %v1787 = vmul.f32 %v307, %v1759
      %v1788 = vmul.f32 %v308, %v1759
      %v1789 = vmul.f32 %v309, %v1759
      %v1790 = vmul.f32 %v310, %v1759
      %v1791 = vmul.f32 %v311, %v1759
      %v1792 = vmul.f32 %v312, %v1759
      %v1793 = vmul.f32 %v313, %v1759
      %v1794 = vmul.f32 %v314, %v1759
      %v1795 = vmul.f32 %v315, %v1759
      %v1796 = vmul.f32 %v316, %v1759
      %v1797 = vmul.f32 %v317, %v1759
      %v1798 = vmul.f32 %v318, %v1759
      %v1799 = vmul.f32 %v319, %v1759
      %v1800 = vmul.f32 %v320, %v1759
      %v1801 = vmul.f32 %v321, %v1759
      %v1802 = vmul.f32 %v322, %v1759
      %v1803 = vmul.f32 %v323, %v1759
      %v1804 = vmul.f32 %v324, %v1759
      %v1805 = vmul.f32 %v325, %v1759
      %v1806 = vmul.f32 %v326, %v1759
      %v1807 = vmul.f32 %v327, %v1759
      %v1856 = vrot.slane %v1760, 2
      %v1857 = vrot.slane %v1761, 2
      %v1858 = vsel %vm743, %v1856, %v1857
      %v1859 = vrot.slane %v1762, 2
      %v1860 = vsel %vm743, %v1857, %v1859
      %v1861 = vrot.slane %v1763, 2
      %v1862 = vrot.slane %v1764, 2
      %v1863 = vsel %vm743, %v1861, %v1862
      %v1864 = vrot.slane %v1765, 2
      %v1865 = vsel %vm743, %v1862, %v1864
      %v1866 = vrot.slane %v1766, 2
      %v1867 = vrot.slane %v1767, 2
      %v1868 = vsel %vm743, %v1866, %v1867
      %v1869 = vrot.slane %v1768, 2
      %v1870 = vsel %vm743, %v1867, %v1869
      %v1871 = vrot.slane %v1769, 2
      %v1872 = vrot.slane %v1770, 2
      %v1873 = vsel %vm743, %v1871, %v1872
      %v1874 = vrot.slane %v1771, 2
      %v1875 = vsel %vm743, %v1872, %v1874
      %v1876 = vrot.slane %v1772, 2
      %v1877 = vrot.slane %v1773, 2
      %v1878 = vsel %vm743, %v1876, %v1877
      %v1879 = vrot.slane %v1774, 2
      %v1880 = vsel %vm743, %v1877, %v1879
      %v1881 = vrot.slane %v1775, 2
      %v1882 = vrot.slane %v1776, 2
      %v1883 = vsel %vm743, %v1881, %v1882
      %v1884 = vrot.slane %v1777, 2
      %v1885 = vsel %vm743, %v1882, %v1884
      %v1886 = vrot.slane %v1778, 2
      %v1887 = vrot.slane %v1779, 2
      %v1888 = vsel %vm743, %v1886, %v1887
      %v1889 = vrot.slane %v1780, 2
      %v1890 = vsel %vm743, %v1887, %v1889
      %v1891 = vrot.slane %v1781, 2
      %v1892 = vrot.slane %v1782, 2
      %v1893 = vsel %vm743, %v1891, %v1892
      %v1894 = vrot.slane %v1783, 2
      %v1895 = vsel %vm743, %v1892, %v1894
      %v1896 = vrot.slane %v1784, 2
      %v1897 = vrot.slane %v1785, 2
      %v1898 = vsel %vm743, %v1896, %v1897
      %v1899 = vrot.slane %v1786, 2
      %v1900 = vsel %vm743, %v1897, %v1899
      %v1901 = vrot.slane %v1787, 2
      %v1902 = vrot.slane %v1788, 2
      %v1903 = vsel %vm743, %v1901, %v1902
      %v1904 = vrot.slane %v1789, 2
      %v1905 = vsel %vm743, %v1902, %v1904
      %v1906 = vrot.slane %v1790, 2
      %v1907 = vrot.slane %v1791, 2
      %v1908 = vsel %vm743, %v1906, %v1907
      %v1909 = vrot.slane %v1792, 2
      %v1910 = vsel %vm743, %v1907, %v1909
      %v1911 = vrot.slane %v1793, 2
      %v1912 = vrot.slane %v1794, 2
      %v1913 = vsel %vm743, %v1911, %v1912
      %v1914 = vrot.slane %v1795, 2
      %v1915 = vsel %vm743, %v1912, %v1914
      %v1916 = vrot.slane %v1796, 2
      %v1917 = vrot.slane %v1797, 2
      %v1918 = vsel %vm743, %v1916, %v1917
      %v1919 = vrot.slane %v1798, 2
      %v1920 = vsel %vm743, %v1917, %v1919
      %v1921 = vrot.slane %v1799, 2
      %v1922 = vrot.slane %v1800, 2
      %v1923 = vsel %vm743, %v1921, %v1922
      %v1924 = vrot.slane %v1801, 2
      %v1925 = vsel %vm743, %v1922, %v1924
      %v1926 = vrot.slane %v1802, 2
      %v1927 = vrot.slane %v1803, 2
      %v1928 = vsel %vm743, %v1926, %v1927
      %v1929 = vrot.slane %v1804, 2
      %v1930 = vsel %vm743, %v1927, %v1929
      %v1931 = vrot.slane %v1805, 2
      %v1932 = vrot.slane %v1806, 2
      %v1933 = vsel %vm743, %v1931, %v1932
      %v1934 = vrot.slane %v1807, 2
      %v1935 = vsel %vm743, %v1932, %v1934
      %v1968 = vadd.f32 %v1724, %v1858
      %v1969 = vadd.f32 %v1725, %v1860
      %v1970 = vadd.f32 %v1726, %v1863
      %v1971 = vadd.f32 %v1727, %v1865
      %v1972 = vadd.f32 %v1728, %v1868
      %v1973 = vadd.f32 %v1729, %v1870
      %v1974 = vadd.f32 %v1730, %v1873
      %v1975 = vadd.f32 %v1731, %v1875
      %v1976 = vadd.f32 %v1732, %v1878
      %v1977 = vadd.f32 %v1733, %v1880
      %v1978 = vadd.f32 %v1734, %v1883
      %v1979 = vadd.f32 %v1735, %v1885
      %v1980 = vadd.f32 %v1736, %v1888
      %v1981 = vadd.f32 %v1737, %v1890
      %v1982 = vadd.f32 %v1738, %v1893
      %v1983 = vadd.f32 %v1739, %v1895
      %v1984 = vadd.f32 %v1740, %v1898
      %v1985 = vadd.f32 %v1741, %v1900
      %v1986 = vadd.f32 %v1742, %v1903
      %v1987 = vadd.f32 %v1743, %v1905
      %v1988 = vadd.f32 %v1744, %v1908
      %v1989 = vadd.f32 %v1745, %v1910
      %v1990 = vadd.f32 %v1746, %v1913
      %v1991 = vadd.f32 %v1747, %v1915
      %v1992 = vadd.f32 %v1748, %v1918
      %v1993 = vadd.f32 %v1749, %v1920
      %v1994 = vadd.f32 %v1750, %v1923
      %v1995 = vadd.f32 %v1751, %v1925
      %v1996 = vadd.f32 %v1752, %v1928
      %v1997 = vadd.f32 %v1753, %v1930
      %v1998 = vadd.f32 %v1754, %v1933
      %v1999 = vadd.f32 %v1755, %v1935
      %v2000 = vld [vmem:[%s262] sm:$0x1]
      %v2002 = vlaneseq
      %v2003 = vshrl.u32 %v2002, 7
      %v2004 = vsub.s32 0, %v2003
      %v2005 = vrot.slane %v2000, %v2004
      %v2007 = vmul.f32 %v1968, %v2005
      %v2008 = vmul.f32 %v1969, %v2005
      %v2009 = vmul.f32 %v1970, %v2005
      %v2010 = vmul.f32 %v1971, %v2005
      %v2011 = vmul.f32 %v1972, %v2005
      %v2012 = vmul.f32 %v1973, %v2005
      %v2013 = vmul.f32 %v1974, %v2005
      %v2014 = vmul.f32 %v1975, %v2005
      %v2015 = vmul.f32 %v1976, %v2005
      %v2016 = vmul.f32 %v1977, %v2005
      %v2017 = vmul.f32 %v1978, %v2005
      %v2018 = vmul.f32 %v1979, %v2005
      %v2019 = vmul.f32 %v1980, %v2005
      %v2020 = vmul.f32 %v1981, %v2005
      %v2021 = vmul.f32 %v1982, %v2005
      %v2022 = vmul.f32 %v1983, %v2005
      %v2023 = vmul.f32 %v1984, %v2005
      %v2024 = vmul.f32 %v1985, %v2005
      %v2025 = vmul.f32 %v1986, %v2005
      %v2026 = vmul.f32 %v1987, %v2005
      %v2027 = vmul.f32 %v1988, %v2005
      %v2028 = vmul.f32 %v1989, %v2005
      %v2029 = vmul.f32 %v1990, %v2005
      %v2030 = vmul.f32 %v1991, %v2005
      %v2031 = vmul.f32 %v1992, %v2005
      %v2032 = vmul.f32 %v1993, %v2005
      %v2033 = vmul.f32 %v1994, %v2005
      %v2034 = vmul.f32 %v1995, %v2005
      %v2035 = vmul.f32 %v1996, %v2005
      %v2036 = vmul.f32 %v1997, %v2005
      %v2037 = vmul.f32 %v1998, %v2005
      %v2038 = vmul.f32 %v1999, %v2005
      %v2039 = vld [vmem:[%s265] sm:$0x1]
      %v2041 = vlaneseq
      %v2042 = vshrl.u32 %v2041, 7
      %v2043 = vsub.s32 0, %v2042
      %v2044 = vrot.slane %v2039, %v2043
      %v2046 = vadd.f32 %v2007, %v2044
      %v2047 = vadd.f32 %v2008, %v2044
      %v2048 = vadd.f32 %v2009, %v2044
      %v2049 = vadd.f32 %v2010, %v2044
      %v2050 = vadd.f32 %v2011, %v2044
      %v2051 = vadd.f32 %v2012, %v2044
      %v2052 = vadd.f32 %v2013, %v2044
      %v2053 = vadd.f32 %v2014, %v2044
      %v2054 = vadd.f32 %v2015, %v2044
      %v2055 = vadd.f32 %v2016, %v2044
      %v2056 = vadd.f32 %v2017, %v2044
      %v2057 = vadd.f32 %v2018, %v2044
      %v2058 = vadd.f32 %v2019, %v2044
      %v2059 = vadd.f32 %v2020, %v2044
      %v2060 = vadd.f32 %v2021, %v2044
      %v2061 = vadd.f32 %v2022, %v2044
      %v2062 = vadd.f32 %v2023, %v2044
      %v2063 = vadd.f32 %v2024, %v2044
      %v2064 = vadd.f32 %v2025, %v2044
      %v2065 = vadd.f32 %v2026, %v2044
      %v2066 = vadd.f32 %v2027, %v2044
      %v2067 = vadd.f32 %v2028, %v2044
      %v2068 = vadd.f32 %v2029, %v2044
      %v2069 = vadd.f32 %v2030, %v2044
      %v2070 = vadd.f32 %v2031, %v2044
      %v2071 = vadd.f32 %v2032, %v2044
      %v2072 = vadd.f32 %v2033, %v2044
      %v2073 = vadd.f32 %v2034, %v2044
      %v2074 = vadd.f32 %v2035, %v2044
      %v2075 = vadd.f32 %v2036, %v2044
      %v2076 = vadd.f32 %v2037, %v2044
      %v2077 = vadd.f32 %v2038, %v2044
      %v2078 = vxor.u32 %v2046, 2147483648
      %v2079 = vxor.u32 %v2047, 2147483648
      %v2080 = vxor.u32 %v2048, 2147483648
      %v2081 = vxor.u32 %v2049, 2147483648
      %v2082 = vxor.u32 %v2050, 2147483648
      %v2083 = vxor.u32 %v2051, 2147483648
      %v2084 = vxor.u32 %v2052, 2147483648
      %v2085 = vxor.u32 %v2053, 2147483648
      %v2086 = vxor.u32 %v2054, 2147483648
      %v2087 = vxor.u32 %v2055, 2147483648
      %v2088 = vxor.u32 %v2056, 2147483648
      %v2089 = vxor.u32 %v2057, 2147483648
      %v2090 = vxor.u32 %v2058, 2147483648
      %v2091 = vxor.u32 %v2059, 2147483648
      %v2092 = vxor.u32 %v2060, 2147483648
      %v2093 = vxor.u32 %v2061, 2147483648
      %v2094 = vxor.u32 %v2062, 2147483648
      %v2095 = vxor.u32 %v2063, 2147483648
      %v2096 = vxor.u32 %v2064, 2147483648
      %v2097 = vxor.u32 %v2065, 2147483648
      %v2098 = vxor.u32 %v2066, 2147483648
      %v2099 = vxor.u32 %v2067, 2147483648
      %v2100 = vxor.u32 %v2068, 2147483648
      %v2101 = vxor.u32 %v2069, 2147483648
      %v2102 = vxor.u32 %v2070, 2147483648
      %v2103 = vxor.u32 %v2071, 2147483648
      %v2104 = vxor.u32 %v2072, 2147483648
      %v2105 = vxor.u32 %v2073, 2147483648
      %v2106 = vxor.u32 %v2074, 2147483648
      %v2107 = vxor.u32 %v2075, 2147483648
      %v2108 = vxor.u32 %v2076, 2147483648
      %v2109 = vxor.u32 %v2077, 2147483648
      %v2110 = vmul.f32 %v2078, 1.442695
      %v2111 = vpow.pop %v2110
      %v2112 = vmul.f32 %v2079, 1.442695
      %v2113 = vpow.pop %v2112
      %v2114 = vmul.f32 %v2080, 1.442695
      %v2115 = vpow.pop %v2114
      %v2116 = vmul.f32 %v2081, 1.442695
      %v2117 = vpow.pop %v2116
      %v2118 = vmul.f32 %v2082, 1.442695
      %v2119 = vpow.pop %v2118
      %v2120 = vmul.f32 %v2083, 1.442695
      %v2121 = vpow.pop %v2120
      %v2122 = vmul.f32 %v2084, 1.442695
      %v2123 = vpow.pop %v2122
      %v2124 = vmul.f32 %v2085, 1.442695
      %v2125 = vpow.pop %v2124
      %v2126 = vmul.f32 %v2086, 1.442695
      %v2127 = vpow.pop %v2126
      %v2128 = vmul.f32 %v2087, 1.442695
      %v2129 = vpow.pop %v2128
      %v2130 = vmul.f32 %v2088, 1.442695
      %v2131 = vpow.pop %v2130
      %v2132 = vmul.f32 %v2089, 1.442695
      %v2133 = vpow.pop %v2132
      %v2134 = vmul.f32 %v2090, 1.442695
      %v2135 = vpow.pop %v2134
      %v2136 = vmul.f32 %v2091, 1.442695
      %v2137 = vpow.pop %v2136
      %v2138 = vmul.f32 %v2092, 1.442695
      %v2139 = vpow.pop %v2138
      %v2140 = vmul.f32 %v2093, 1.442695
      %v2141 = vpow.pop %v2140
      %v2142 = vmul.f32 %v2094, 1.442695
      %v2143 = vpow.pop %v2142
      %v2144 = vmul.f32 %v2095, 1.442695
      %v2145 = vpow.pop %v2144
      %v2146 = vmul.f32 %v2096, 1.442695
      %v2147 = vpow.pop %v2146
      %v2148 = vmul.f32 %v2097, 1.442695
      %v2149 = vpow.pop %v2148
      %v2150 = vmul.f32 %v2098, 1.442695
      %v2151 = vpow.pop %v2150
      %v2152 = vmul.f32 %v2099, 1.442695
      %v2153 = vpow.pop %v2152
      %v2154 = vmul.f32 %v2100, 1.442695
      %v2155 = vpow.pop %v2154
      %v2156 = vmul.f32 %v2101, 1.442695
      %v2157 = vpow.pop %v2156
      %v2158 = vmul.f32 %v2102, 1.442695
      %v2159 = vpow.pop %v2158
      %v2160 = vmul.f32 %v2103, 1.442695
      %v2161 = vpow.pop %v2160
      %v2162 = vmul.f32 %v2104, 1.442695
      %v2163 = vpow.pop %v2162
      %v2164 = vmul.f32 %v2105, 1.442695
      %v2165 = vpow.pop %v2164
      %v2166 = vmul.f32 %v2106, 1.442695
      %v2167 = vpow.pop %v2166
      %v2168 = vmul.f32 %v2107, 1.442695
      %v2169 = vpow.pop %v2168
      %v2170 = vmul.f32 %v2108, 1.442695
      %v2171 = vpow.pop %v2170
      %v2172 = vmul.f32 %v2109, 1.442695
      %v2173 = vpow.pop %v2172
      %v2174 = vadd.f32 %v2111, 1.0
      %v2175 = vadd.f32 %v2113, 1.0
      %v2176 = vadd.f32 %v2115, 1.0
      %v2177 = vadd.f32 %v2117, 1.0
      %v2178 = vadd.f32 %v2119, 1.0
      %v2179 = vadd.f32 %v2121, 1.0
      %v2180 = vadd.f32 %v2123, 1.0
      %v2181 = vadd.f32 %v2125, 1.0
      %v2182 = vadd.f32 %v2127, 1.0
      %v2183 = vadd.f32 %v2129, 1.0
      %v2184 = vadd.f32 %v2131, 1.0
      %v2185 = vadd.f32 %v2133, 1.0
      %v2186 = vadd.f32 %v2135, 1.0
      %v2187 = vadd.f32 %v2137, 1.0
      %v2188 = vadd.f32 %v2139, 1.0
      %v2189 = vadd.f32 %v2141, 1.0
      %v2190 = vadd.f32 %v2143, 1.0
      %v2191 = vadd.f32 %v2145, 1.0
      %v2192 = vadd.f32 %v2147, 1.0
      %v2193 = vadd.f32 %v2149, 1.0
      %v2194 = vadd.f32 %v2151, 1.0
      %v2195 = vadd.f32 %v2153, 1.0
      %v2196 = vadd.f32 %v2155, 1.0
      %v2197 = vadd.f32 %v2157, 1.0
      %v2198 = vadd.f32 %v2159, 1.0
      %v2199 = vadd.f32 %v2161, 1.0
      %v2200 = vadd.f32 %v2163, 1.0
      %v2201 = vadd.f32 %v2165, 1.0
      %v2202 = vadd.f32 %v2167, 1.0
      %v2203 = vadd.f32 %v2169, 1.0
      %v2204 = vadd.f32 %v2171, 1.0
      %v2205 = vadd.f32 %v2173, 1.0
      %v2206 = vrcp.pop %v2174
      %v2207 = vmul.f32 1.0, %v2206
      %v2208 = vrcp.pop %v2175
      %v2209 = vmul.f32 1.0, %v2208
      %v2210 = vrcp.pop %v2176
      %v2211 = vmul.f32 1.0, %v2210
      %v2212 = vrcp.pop %v2177
      %v2213 = vmul.f32 1.0, %v2212
      %v2214 = vrcp.pop %v2178
      %v2215 = vmul.f32 1.0, %v2214
      %v2216 = vrcp.pop %v2179
      %v2217 = vmul.f32 1.0, %v2216
      %v2218 = vrcp.pop %v2180
      %v2219 = vmul.f32 1.0, %v2218
      %v2220 = vrcp.pop %v2181
      %v2221 = vmul.f32 1.0, %v2220
      %v2222 = vrcp.pop %v2182
      %v2223 = vmul.f32 1.0, %v2222
      %v2224 = vrcp.pop %v2183
      %v2225 = vmul.f32 1.0, %v2224
      %v2226 = vrcp.pop %v2184
      %v2227 = vmul.f32 1.0, %v2226
      %v2228 = vrcp.pop %v2185
      %v2229 = vmul.f32 1.0, %v2228
      %v2230 = vrcp.pop %v2186
      %v2231 = vmul.f32 1.0, %v2230
      %v2232 = vrcp.pop %v2187
      %v2233 = vmul.f32 1.0, %v2232
      %v2234 = vrcp.pop %v2188
      %v2235 = vmul.f32 1.0, %v2234
      %v2236 = vrcp.pop %v2189
      %v2237 = vmul.f32 1.0, %v2236
      %v2238 = vrcp.pop %v2190
      %v2239 = vmul.f32 1.0, %v2238
      %v2240 = vrcp.pop %v2191
      %v2241 = vmul.f32 1.0, %v2240
      %v2242 = vrcp.pop %v2192
      %v2243 = vmul.f32 1.0, %v2242
      %v2244 = vrcp.pop %v2193
      %v2245 = vmul.f32 1.0, %v2244
      %v2246 = vrcp.pop %v2194
      %v2247 = vmul.f32 1.0, %v2246
      %v2248 = vrcp.pop %v2195
      %v2249 = vmul.f32 1.0, %v2248
      %v2250 = vrcp.pop %v2196
      %v2251 = vmul.f32 1.0, %v2250
      %v2252 = vrcp.pop %v2197
      %v2253 = vmul.f32 1.0, %v2252
      %v2254 = vrcp.pop %v2198
      %v2255 = vmul.f32 1.0, %v2254
      %v2256 = vrcp.pop %v2199
      %v2257 = vmul.f32 1.0, %v2256
      %v2258 = vrcp.pop %v2200
      %v2259 = vmul.f32 1.0, %v2258
      %v2260 = vrcp.pop %v2201
      %v2261 = vmul.f32 1.0, %v2260
      %v2262 = vrcp.pop %v2202
      %v2263 = vmul.f32 1.0, %v2262
      %v2264 = vrcp.pop %v2203
      %v2265 = vmul.f32 1.0, %v2264
      %v2266 = vrcp.pop %v2204
      %v2267 = vmul.f32 1.0, %v2266
      %v2268 = vrcp.pop %v2205
      %v2269 = vmul.f32 1.0, %v2268
      %v2270 = vmul.f32 %v2046, %v2207
      %v2271 = vmul.f32 %v2047, %v2209
      %v2272 = vmul.f32 %v2048, %v2211
      %v2273 = vmul.f32 %v2049, %v2213
      %v2274 = vmul.f32 %v2050, %v2215
      %v2275 = vmul.f32 %v2051, %v2217
      %v2276 = vmul.f32 %v2052, %v2219
      %v2277 = vmul.f32 %v2053, %v2221
      %v2278 = vmul.f32 %v2054, %v2223
      %v2279 = vmul.f32 %v2055, %v2225
      %v2280 = vmul.f32 %v2056, %v2227
      %v2281 = vmul.f32 %v2057, %v2229
      %v2282 = vmul.f32 %v2058, %v2231
      %v2283 = vmul.f32 %v2059, %v2233
      %v2284 = vmul.f32 %v2060, %v2235
      %v2285 = vmul.f32 %v2061, %v2237
      %v2286 = vmul.f32 %v2062, %v2239
      %v2287 = vmul.f32 %v2063, %v2241
      %v2288 = vmul.f32 %v2064, %v2243
      %v2289 = vmul.f32 %v2065, %v2245
      %v2290 = vmul.f32 %v2066, %v2247
      %v2291 = vmul.f32 %v2067, %v2249
      %v2292 = vmul.f32 %v2068, %v2251
      %v2293 = vmul.f32 %v2069, %v2253
      %v2294 = vmul.f32 %v2070, %v2255
      %v2295 = vmul.f32 %v2071, %v2257
      %v2296 = vmul.f32 %v2072, %v2259
      %v2297 = vmul.f32 %v2073, %v2261
      %v2298 = vmul.f32 %v2074, %v2263
      %v2299 = vmul.f32 %v2075, %v2265
      %v2300 = vmul.f32 %v2076, %v2267
      %v2301 = vmul.f32 %v2077, %v2269
      %2302 = vst [vmem:[%s273] sm:$0xff] %v2270
      %2303 = vst [vmem:[%s273 + $0x8] sm:$0xff] %v2271
      %2304 = vst [vmem:[%s273 + $0x10] sm:$0xff] %v2272
      %2305 = vst [vmem:[%s273 + $0x18] sm:$0xff] %v2273
      %2306 = vst [vmem:[%s273 + $0x20] sm:$0xff] %v2274
      %2307 = vst [vmem:[%s273 + $0x28] sm:$0xff] %v2275
      %2308 = vst [vmem:[%s273 + $0x30] sm:$0xff] %v2276
      %2309 = vst [vmem:[%s273 + $0x38] sm:$0xff] %v2277
      %2310 = vst [vmem:[%s273 + $0x40] sm:$0xff] %v2278
      %2311 = vst [vmem:[%s273 + $0x48] sm:$0xff] %v2279
      %2312 = vst [vmem:[%s273 + $0x50] sm:$0xff] %v2280
      %2313 = vst [vmem:[%s273 + $0x58] sm:$0xff] %v2281
      %2314 = vst [vmem:[%s273 + $0x60] sm:$0xff] %v2282
      %2315 = vst [vmem:[%s273 + $0x68] sm:$0xff] %v2283
      %2316 = vst [vmem:[%s273 + $0x70] sm:$0xff] %v2284
      %2317 = vst [vmem:[%s273 + $0x78] sm:$0xff] %v2285
      %2318 = vst [vmem:[%s273 + $0x80] sm:$0xff] %v2286
      %2319 = vst [vmem:[%s273 + $0x88] sm:$0xff] %v2287
      %2320 = vst [vmem:[%s273 + $0x90] sm:$0xff] %v2288
      %2321 = vst [vmem:[%s273 + $0x98] sm:$0xff] %v2289
      %2322 = vst [vmem:[%s273 + $0xa0] sm:$0xff] %v2290
      %2323 = vst [vmem:[%s273 + $0xa8] sm:$0xff] %v2291
      %2324 = vst [vmem:[%s273 + $0xb0] sm:$0xff] %v2292
      %2325 = vst [vmem:[%s273 + $0xb8] sm:$0xff] %v2293
      %2326 = vst [vmem:[%s273 + $0xc0] sm:$0xff] %v2294
      %2327 = vst [vmem:[%s273 + $0xc8] sm:$0xff] %v2295
      %2328 = vst [vmem:[%s273 + $0xd0] sm:$0xff] %v2296
      %2329 = vst [vmem:[%s273 + $0xd8] sm:$0xff] %v2297
      %2330 = vst [vmem:[%s273 + $0xe0] sm:$0xff] %v2298
      %2331 = vst [vmem:[%s273 + $0xe8] sm:$0xff] %v2299
      %2332 = vst [vmem:[%s273 + $0xf0] sm:$0xff] %v2300
      %2333 = vst [vmem:[%s273 + $0xf8] sm:$0xff] %v2301
      %p2334 = scmp.lt.s32.totalorder %s19, 1
      %s2335 = scalar_select %p2334, %s19, 1
      %p2336 = scmp.lt.s32.totalorder %s20, 0
      %s2337 = scalar_select %p2336, %s20, 0
      %s2338 = smul.addr %s2335, 32
      %s2339 = sadd.s32 %s2337, %s2338
      %s2340 = smul.addr %s2339, 8
      %s2341 = scalar_lea.vmem %s4, %s2340
      // Predicated region
      $region37: #{depthwise_conv_block.1} parent=35 // pred_check
        %p2342 = pneg %p153
      $region38: #{depthwise_conv_block.1} parent=35 // pred_check_branch
        %2344 = sbr.rel (%p2342) target = $region40
      $region39: #{depthwise_conv_block.1} parent=35 // pred_region
        _
      $region40: #{depthwise_conv_block.1} parent=35 // pred_fallthru
        _
    $region36: #{depthwise_conv_block.1} parent=5 // pred_fallthru
      _
    %p2345 = scmp.le.s32.totalorder 2, %s10
    // Predicated region
    $region41: #{depthwise_conv_block.1} parent=5 // pred_check
      %p2346 = pneg %p2345
    $region42: #{depthwise_conv_block.1} parent=5 // pred_check_branch
      %2348 = sbr.rel (%p2346) target = $region44
    $region43: #{depthwise_conv_block.1} parent=5 // pred_region
      %s2349 = ssub.s32 %s10, 2
      // Predicated region
      $region45: #{depthwise_conv_block.1} parent=43 // pred_check
        %p2350 = pneg %p159
      $region46: #{depthwise_conv_block.1} parent=43 // pred_check_branch
        %2352 = sbr.rel (%p2350) target = $region48
      $region47: #{depthwise_conv_block.1} parent=43 // pred_region
        %p2353 = scmp.lt.s32.totalorder %s21, 1
        %s2354 = scalar_select %p2353, %s21, 1
        %p2355 = scmp.lt.s32.totalorder %s22, 0
        %s2356 = scalar_select %p2355, %s22, 0
        %s2357 = smul.addr %s2354, 32
        %s2358 = sadd.s32 %s2356, %s2357
        %s2359 = smul.addr %s2358, 8
        %s2360 = scalar_lea.vmem %s4, %s2359
      $region48: #{depthwise_conv_block.1} parent=43 // pred_fallthru
        _
    $region44: #{depthwise_conv_block.1} parent=5 // pred_fallthru
      _
  $region6: #{depthwise_conv_block.1} parent=0 // loop_footer
    %s14 = sadd.s32 1, %s10
  $region7: #{depthwise_conv_block.1} parent=0 // loop_footer_branch
    %9 = sbr.rel target = $region3
  $region8: #{depthwise_conv_block.1} parent=0 // loop_exit
    _

</llo_original>
